<compile_context>
chip_gen: v6e
topology: v6e:2x2x1
jax: 0.10.0
libtpu: 0.0.40
codegen_flags: <defaults>
</compile_context>

<pallas_src>
import jax
import jax.numpy as jnp
from jax.experimental import pallas as pl
from jax.experimental.pallas import tpu as pltpu


# ---------------------------------------------------------------------------
# GRU stack kernel (grid over layers, VMEM-carried activation, fused gather)
# ---------------------------------------------------------------------------
def _make_gru_stack_kernel(batch, hid_dim, emb_dim, k_max):
    B, H, E = batch, hid_dim, emb_dim

    def kernel(ids_ref, emb_hbm, h_ref, wih_ref, whh_ref, bih_ref, bhh_ref,
               hnew_ref, top_ref, x_buf, gather_sem):
        l = pl.program_id(0)

        # Layer 0 only: DMA-gather the B embedding rows from the HBM table
        # straight into the VMEM activation scratch (replaces jnp.take).
        @pl.when(l == 0)
        def _gather_embedding_rows():
            if E < k_max:
                # Padded w_ih rows are zero; zero the activation tail once so
                # 0 * (uninitialised NaN garbage) cannot poison the matmul.
                x_buf[:, E:] = jnp.zeros((B, k_max - E), x_buf.dtype)
            for b in range(B):
                pltpu.make_async_copy(
                    emb_hbm.at[pl.ds(ids_ref[b], 1), :],
                    x_buf.at[pl.ds(b, 1), pl.ds(0, E)],
                    gather_sem.at[b],
                ).start()
            for b in range(B):
                pltpu.make_async_copy(
                    emb_hbm.at[pl.ds(ids_ref[b], 1), :],
                    x_buf.at[pl.ds(b, 1), pl.ds(0, E)],
                    gather_sem.at[b],
                ).wait()
            # self.dropout(embedded) is the identity in eval mode.

        x = x_buf[...]                              # (B, Kmax) f32 running activation
        h = h_ref[0]                                # (B, H)    f32 hidden, layer l
        wih = wih_ref[0]                            # (Kmax,3H) bf16, gates r|z|n
        whh = whh_ref[0]                            # (H,  3H)  bf16

        # Two gate-fused MXU matmuls per layer, f32 accumulation.
        gi = jnp.dot(x.astype(jnp.bfloat16), wih,
                     preferred_element_type=jnp.float32) + bih_ref[0]      # (B, 3H)
        gh = jnp.dot(h.astype(jnp.bfloat16), whh,
                     preferred_element_type=jnp.float32) + bhh_ref[0]      # (B, 3H)

        # PyTorch GRU math (gate order r, z, n), kept in f32.
        r = jax.nn.sigmoid(gi[:, 0:H] + gh[:, 0:H])
        z = jax.nn.sigmoid(gi[:, H:2 * H] + gh[:, H:2 * H])
        n = jnp.tanh(gi[:, 2 * H:3 * H] + r * gh[:, 2 * H:3 * H])
        h_new = (1.0 - z) * n + z * h               # (B, H) f32

        hnew_ref[0] = h_new                         # per-layer hidden writeback
        top_ref[...] = h_new.astype(jnp.bfloat16)   # resident; last layer's value persists
        # Inter-layer dropout is identity; carry h_new as next layer's input.
        x_buf[:, 0:H] = h_new

    return kernel


def gru_stack(input_ids, emb_table, hidden, w_ih_all, w_hh_all, b_ih_all, b_hh_all):
    """One decode step of the whole n_layer GRU stack in a single pallas_call."""
    L, B, H = hidden.shape
    E = emb_table.shape[1]
    k_max = w_ih_all.shape[1]

    # Scoped-VMEM budget: double-buffered per-layer blocks + residents + slack.
    per_layer_blocks = (
        k_max * 3 * H * 2      # w_ih  bf16
        + H * 3 * H * 2        # w_hh  bf16
        + 2 * 3 * H * 4        # biases f32
        + 2 * B * H * 4        # hidden in + hidden out f32
    )
    resident = B * H * 2 + B * k_max * 4
    vmem_limit = int(min(max(2 * per_layer_blocks + resident + (4 << 20),
                             32 << 20), 64 << 20))

    grid_spec = pltpu.PrefetchScalarGridSpec(
        num_scalar_prefetch=1,                                            # input_ids -> SMEM
        grid=(L,),
        in_specs=[
            pl.BlockSpec(memory_space=pl.ANY),                            # embedding table (HBM)
            pl.BlockSpec((1, B, H), lambda l, ids: (l, 0, 0)),            # hidden (layer l)
            pl.BlockSpec((1, k_max, 3 * H), lambda l, ids: (l, 0, 0)),    # w_ih  (layer l)
            pl.BlockSpec((1, H, 3 * H), lambda l, ids: (l, 0, 0)),        # w_hh  (layer l)
            pl.BlockSpec((1, 1, 3 * H), lambda l, ids: (l, 0, 0)),        # b_ih  (layer l)
            pl.BlockSpec((1, 1, 3 * H), lambda l, ids: (l, 0, 0)),        # b_hh  (layer l)
        ],
        out_specs=[
            pl.BlockSpec((1, B, H), lambda l, ids: (l, 0, 0)),            # new hidden
            pl.BlockSpec((B, H), lambda l, ids: (0, 0)),                  # top-layer output
        ],
        scratch_shapes=[
            pltpu.VMEM((B, k_max), jnp.float32),                          # activation carry
            pltpu.SemaphoreType.DMA((B,)),                                # gather semaphores
        ],
    )

    return pl.pallas_call(
        _make_gru_stack_kernel(B, H, E, k_max),
        out_shape=(
            jax.ShapeDtypeStruct((L, B, H), jnp.float32),
            jax.ShapeDtypeStruct((B, H), jnp.bfloat16),
        ),
        grid_spec=grid_spec,
        compiler_params=pltpu.CompilerParams(
            dimension_semantics=("arbitrary",),       # layers are a sequential carry
            vmem_limit_bytes=vmem_limit,
        ),
    )(input_ids, emb_table, hidden, w_ih_all, w_hh_all, b_ih_all, b_hh_all)


# ---------------------------------------------------------------------------
# fc_out: vocab-tiled, lane-dense projection
# ---------------------------------------------------------------------------
def _fc_kernel(x_ref, w_ref, b_ref, o_ref):
    o_ref[...] = (
        jnp.dot(x_ref[...], w_ref[...], preferred_element_type=jnp.float32)
        + b_ref[...]
    ).astype(o_ref.dtype)


def fc_out(x_top, w_t, b, *, tn=1024):
    """Vocab-tiled projection. w_t is pre-transposed (H, V) bf16, b is (1, V) f32."""
    B, H = x_top.shape
    V = w_t.shape[1]
    tn = min(tn, V)
    num_tiles = pl.cdiv(V, tn)

    w_index = lambda j: (0, j)
    w_spec = pl.BlockSpec((H, tn), w_index)
    if num_tiles >= 3:
        # 3-deep weight pipeline: keep two weight-tile DMAs in flight behind
        # the bandwidth-bound matmul.
        try:
            w_spec = pl.BlockSpec((H, tn), w_index, pipeline_mode=pl.Buffered(3))
        except (AttributeError, TypeError):
            w_spec = pl.BlockSpec((H, tn), w_index)

    vmem_limit = int(min(max(
        3 * H * tn * 2          # up to 3 weight-tile buffers (bf16)
        + 2 * B * tn * 4        # double-buffered output tiles (f32)
        + 2 * tn * 4            # bias tiles
        + 2 * B * H * 2         # activation (bf16)
        + (4 << 20), 32 << 20), 64 << 20))

    return pl.pallas_call(
        _fc_kernel,
        out_shape=jax.ShapeDtypeStruct((B, V), jnp.float32),
        grid=(num_tiles,),
        in_specs=[
            pl.BlockSpec((B, H), lambda j: (0, 0)),
            w_spec,
            pl.BlockSpec((1, tn), lambda j: (0, j)),
        ],
        out_specs=pl.BlockSpec((B, tn), lambda j: (0, j)),
        compiler_params=pltpu.CompilerParams(
            dimension_semantics=("parallel",),        # vocab tiles split across TCs
            vmem_limit_bytes=vmem_limit,
        ),
    )(x_top, w_t, b)


# ---------------------------------------------------------------------------
# Forward
# ---------------------------------------------------------------------------
def decoder_forward(params, input_ids, hidden):
    """Equivalent of Decoder.forward(input, hidden) with cell_type='gru'.

    input_ids: (B,) int32 token indices  (PyTorch `input` before unsqueeze(0))
    hidden:    (n_layers, B, H) f32
    returns (prediction (B, output_dim) f32, new_hidden (n_layers, B, H) f32)
    """
    # TODO(synk): fc_out could be fused into the GRU pallas_call (GRU under
    # pl.when(j==0), vocab tiles per grid step) to save a launch, but that
    # would lose the vocab-parallel dual-core split on v7x; kept separate.
    new_hidden, top = gru_stack(
        input_ids, params["embedding"], hidden,
        params["w_ih_all"], params["w_hh_all"],
        params["b_ih_all"], params["b_hh_all"])
    prediction = fc_out(top, params["fc_w_t"], params["fc_b"])
    return prediction, new_hidden


# ---------------------------------------------------------------------------
# Parameter init (PyTorch layout) + one-time prep (transpose/gate-concat/bf16)
# ---------------------------------------------------------------------------
def init_raw_params(key, output_dim, emb_dim, hid_dim, n_layers):
    keys = jax.random.split(key, 3 + 4 * n_layers)
    k = iter(keys)
    scale = 0.1
    raw = {
        "embedding": scale * jax.random.normal(next(k), (output_dim, emb_dim), jnp.float32),
        "gru": [],
        "fc_w": scale * jax.random.normal(next(k), (output_dim, hid_dim), jnp.float32),
        "fc_b": scale * jax.random.normal(next(k), (output_dim,), jnp.float32),
    }
    for l in range(n_layers):
        in_dim = emb_dim if l == 0 else hid_dim
        raw["gru"].append({
            "w_ih": scale * jax.random.normal(next(k), (3 * hid_dim, in_dim), jnp.float32),
            "w_hh": scale * jax.random.normal(next(k), (3 * hid_dim, hid_dim), jnp.float32),
            "b_ih": scale * jax.random.normal(next(k), (3 * hid_dim,), jnp.float32),
            "b_hh": scale * jax.random.normal(next(k), (3 * hid_dim,), jnp.float32),
        })
    return raw


def prep_params(raw):
    """One-time weight prep: pre-transpose, gate-concat (r|z|n), stack, bf16."""
    H = raw["gru"][0]["w_hh"].shape[1]
    E = raw["embedding"].shape[1]
    k_max = max(E, H)
    w_ih_all, w_hh_all, b_ih_all, b_hh_all = [], [], [], []
    for lp in raw["gru"]:
        in_dim = lp["w_ih"].shape[1]
        w_ih_t = jnp.transpose(lp["w_ih"])              # (in, 3H), columns r|z|n
        if in_dim < k_max:
            w_ih_t = jnp.pad(w_ih_t, ((0, k_max - in_dim), (0, 0)))
        w_ih_all.append(w_ih_t)
        w_hh_all.append(jnp.transpose(lp["w_hh"]))      # (H, 3H)
        b_ih_all.append(lp["b_ih"].reshape(1, -1))
        b_hh_all.append(lp["b_hh"].reshape(1, -1))
    return {
        "embedding": raw["embedding"].astype(jnp.float32),          # (V, E), DMA-gathered rows
        "w_ih_all": jnp.stack(w_ih_all).astype(jnp.bfloat16),       # (L, Kmax, 3H)
        "w_hh_all": jnp.stack(w_hh_all).astype(jnp.bfloat16),       # (L, H, 3H)
        "b_ih_all": jnp.stack(b_ih_all).astype(jnp.float32),        # (L, 1, 3H)
        "b_hh_all": jnp.stack(b_hh_all).astype(jnp.float32),        # (L, 1, 3H)
        "fc_w_t": jnp.transpose(raw["fc_w"]).astype(jnp.bfloat16),  # (H, V)
        "fc_b": raw["fc_b"].reshape(1, -1).astype(jnp.float32),     # (1, V)
    }


# ---------------------------------------------------------------------------
# Pure-JAX f32 reference (PyTorch GRU math) for a sanity check
# ---------------------------------------------------------------------------
def decoder_forward_ref(raw, input_ids, hidden):
    x = jnp.take(raw["embedding"], input_ids, axis=0)
    new_hidden = []
    for l, layer in enumerate(raw["gru"]):
        h = hidden[l]
        H = h.shape[-1]
        gi = x @ layer["w_ih"].T + layer["b_ih"]
        gh = h @ layer["w_hh"].T + layer["b_hh"]
        r = jax.nn.sigmoid(gi[:, :H] + gh[:, :H])
        z = jax.nn.sigmoid(gi[:, H:2 * H] + gh[:, H:2 * H])
        n = jnp.tanh(gi[:, 2 * H:] + r * gh[:, 2 * H:])
        h_new = (1.0 - z) * n + z * h
        new_hidden.append(h_new)
        x = h_new
    pred = x @ raw["fc_w"].T + raw["fc_b"]
    return pred, jnp.stack(new_hidden, axis=0)


if __name__ == "__main__":
    # Small but lane-friendly shapes: H (and E) a multiple of 128 so the gate
    # slices / stores are tile-aligned; vocab a multiple of the fc tile so the
    # vocab-tiled projection exercises the multi-step, deep-buffered pipeline.
    output_dim = 4096  # vocab size
    emb_dim = 128
    hid_dim = 128
    n_layers = 2
    batch = 8

    root = jax.random.PRNGKey(0)
    k_params, k_ids, k_hidden = jax.random.split(root, 3)

    raw_params = init_raw_params(k_params, output_dim, emb_dim, hid_dim, n_layers)
    params = prep_params(raw_params)

    input_ids = jax.random.randint(k_ids, (batch,), 0, output_dim, dtype=jnp.int32)
    hidden = jax.random.normal(k_hidden, (n_layers, batch, hid_dim), jnp.float32)

    pred_ref, hid_ref = decoder_forward_ref(raw_params, input_ids, hidden)
    pred_ref = jax.block_until_ready(pred_ref)
    hid_ref = jax.block_until_ready(hid_ref)

    prediction, new_hidden = decoder_forward(params, input_ids, hidden)
    prediction = jax.block_until_ready(prediction)
    new_hidden = jax.block_until_ready(new_hidden)

    assert prediction.shape == (batch, output_dim)
    assert new_hidden.shape == (n_layers, batch, hid_dim)

    # bf16 MXU operands -> wider tolerance than a pure-f32 comparison.
    assert bool(jnp.allclose(new_hidden, hid_ref, atol=3e-2, rtol=3e-2))
    assert bool(jnp.allclose(prediction, pred_ref, atol=6e-2, rtol=3e-2))

    print("KERNEL_OK")
</pallas_src>

<mosaic_0001>
module attributes {stable_mosaic.version = 11 : i64} {
  func.func @kernel(%arg0: i32, %arg1: memref<8xi32, #tpu.memory_space<smem>>, %arg2: memref<4096x128xf32, #tpu.memory_space<any>>, %arg3: memref<1x8x128xf32, #tpu.memory_space<vmem>>, %arg4: memref<1x128x384xbf16, #tpu.memory_space<vmem>>, %arg5: memref<1x128x384xbf16, #tpu.memory_space<vmem>>, %arg6: memref<1x1x384xf32, #tpu.memory_space<vmem>>, %arg7: memref<1x1x384xf32, #tpu.memory_space<vmem>>, %arg8: memref<1x8x128xf32, #tpu.memory_space<vmem>>, %arg9: memref<8x128xbf16, #tpu.memory_space<vmem>>, %arg10: memref<8x128xf32, #tpu.memory_space<vmem>>, %arg11: memref<8x!tpu.dma_semaphore, #tpu.memory_space<semaphore_mem>>) attributes {dimension_semantics = [#tpu.dimension_semantics<arbitrary>], iteration_bounds = array<i64: 2>, scalar_prefetch = 1 : i64, scratch_operands = 2 : i64, tpu.core_type = #tpu.core_type<tc>, window_params = [{}, {transform_indices = @transform_1, window_bounds = array<i64: 1, 8, 128>}, {transform_indices = @transform_2, window_bounds = array<i64: 1, 128, 384>}, {transform_indices = @transform_3, window_bounds = array<i64: 1, 128, 384>}, {transform_indices = @transform_4, window_bounds = array<i64: 1, 1, 384>}, {transform_indices = @transform_5, window_bounds = array<i64: 1, 1, 384>}, {transform_indices = @transform_6, window_bounds = array<i64: 1, 8, 128>}, {pipeline_mode = #tpu.pipeline_mode<synchronous>, transform_indices = @transform_7, window_bounds = array<i64: 8, 128>}]} {
    %c0_i32 = arith.constant 0 : i32
    %0 = arith.cmpi eq, %arg0, %c0_i32 : i32
    %1 = arith.extui %0 : i1 to i32
    %c0_i32_0 = arith.constant 0 : i32
    %2 = arith.cmpi ne, %1, %c0_i32_0 : i32
    scf.if %2 {
      %c0_28 = arith.constant 0 : index
      %54 = memref.load %arg1[%c0_28] : memref<8xi32, #tpu.memory_space<smem>>
      %c0_i32_29 = arith.constant 0 : i32
      %c0_i32_30 = arith.constant 0 : i32
      %55 = tpu.memref_slice %arg2[%54, %c0_i32_30] : memref<4096x128xf32, #tpu.memory_space<any>> -> memref<1x128xf32, #tpu.memory_space<any>>
      %c0_i32_31 = arith.constant 0 : i32
      %c0_i32_32 = arith.constant 0 : i32
      %56 = tpu.memref_slice %arg10[%c0_i32_31, %c0_i32_32] : memref<8x128xf32, #tpu.memory_space<vmem>> -> memref<1x128xf32, #tpu.memory_space<vmem>>
      %57 = tpu.memref_slice %arg11[%c0_i32_29] : memref<8x!tpu.dma_semaphore, #tpu.memory_space<semaphore_mem>> -> memref<1x!tpu.dma_semaphore, #tpu.memory_space<semaphore_mem>>
      %58 = tpu.memref_squeeze %57 : memref<1x!tpu.dma_semaphore, #tpu.memory_space<semaphore_mem>> -> memref<!tpu.dma_semaphore, #tpu.memory_space<semaphore_mem>>
      tpu.enqueue_dma source(%55 : memref<1x128xf32, #tpu.memory_space<any>>) target(%56 : memref<1x128xf32, #tpu.memory_space<vmem>>) target_semaphore(%58 : memref<!tpu.dma_semaphore, #tpu.memory_space<semaphore_mem>>)
      %c1 = arith.constant 1 : index
      %59 = memref.load %arg1[%c1] : memref<8xi32, #tpu.memory_space<smem>>
      %c1_i32 = arith.constant 1 : i32
      %c0_i32_33 = arith.constant 0 : i32
      %60 = tpu.memref_slice %arg2[%59, %c0_i32_33] : memref<4096x128xf32, #tpu.memory_space<any>> -> memref<1x128xf32, #tpu.memory_space<any>>
      %c1_i32_34 = arith.constant 1 : i32
      %c0_i32_35 = arith.constant 0 : i32
      %61 = tpu.memref_slice %arg10[%c1_i32_34, %c0_i32_35] : memref<8x128xf32, #tpu.memory_space<vmem>> -> memref<1x128xf32, #tpu.memory_space<vmem>>
      %62 = tpu.memref_slice %arg11[%c1_i32] : memref<8x!tpu.dma_semaphore, #tpu.memory_space<semaphore_mem>> -> memref<1x!tpu.dma_semaphore, #tpu.memory_space<semaphore_mem>>
      %63 = tpu.memref_squeeze %62 : memref<1x!tpu.dma_semaphore, #tpu.memory_space<semaphore_mem>> -> memref<!tpu.dma_semaphore, #tpu.memory_space<semaphore_mem>>
      tpu.enqueue_dma source(%60 : memref<1x128xf32, #tpu.memory_space<any>>) target(%61 : memref<1x128xf32, #tpu.memory_space<vmem>>) target_semaphore(%63 : memref<!tpu.dma_semaphore, #tpu.memory_space<semaphore_mem>>)
      %c2 = arith.constant 2 : index
      %64 = memref.load %arg1[%c2] : memref<8xi32, #tpu.memory_space<smem>>
      %c2_i32 = arith.constant 2 : i32
      %c0_i32_36 = arith.constant 0 : i32
      %65 = tpu.memref_slice %arg2[%64, %c0_i32_36] : memref<4096x128xf32, #tpu.memory_space<any>> -> memref<1x128xf32, #tpu.memory_space<any>>
      %c2_i32_37 = arith.constant 2 : i32
      %c0_i32_38 = arith.constant 0 : i32
      %66 = tpu.memref_slice %arg10[%c2_i32_37, %c0_i32_38] : memref<8x128xf32, #tpu.memory_space<vmem>> -> memref<1x128xf32, #tpu.memory_space<vmem>>
      %67 = tpu.memref_slice %arg11[%c2_i32] : memref<8x!tpu.dma_semaphore, #tpu.memory_space<semaphore_mem>> -> memref<1x!tpu.dma_semaphore, #tpu.memory_space<semaphore_mem>>
      %68 = tpu.memref_squeeze %67 : memref<1x!tpu.dma_semaphore, #tpu.memory_space<semaphore_mem>> -> memref<!tpu.dma_semaphore, #tpu.memory_space<semaphore_mem>>
      tpu.enqueue_dma source(%65 : memref<1x128xf32, #tpu.memory_space<any>>) target(%66 : memref<1x128xf32, #tpu.memory_space<vmem>>) target_semaphore(%68 : memref<!tpu.dma_semaphore, #tpu.memory_space<semaphore_mem>>)
      %c3 = arith.constant 3 : index
      %69 = memref.load %arg1[%c3] : memref<8xi32, #tpu.memory_space<smem>>
      %c3_i32 = arith.constant 3 : i32
      %c0_i32_39 = arith.constant 0 : i32
      %70 = tpu.memref_slice %arg2[%69, %c0_i32_39] : memref<4096x128xf32, #tpu.memory_space<any>> -> memref<1x128xf32, #tpu.memory_space<any>>
      %c3_i32_40 = arith.constant 3 : i32
      %c0_i32_41 = arith.constant 0 : i32
      %71 = tpu.memref_slice %arg10[%c3_i32_40, %c0_i32_41] : memref<8x128xf32, #tpu.memory_space<vmem>> -> memref<1x128xf32, #tpu.memory_space<vmem>>
      %72 = tpu.memref_slice %arg11[%c3_i32] : memref<8x!tpu.dma_semaphore, #tpu.memory_space<semaphore_mem>> -> memref<1x!tpu.dma_semaphore, #tpu.memory_space<semaphore_mem>>
      %73 = tpu.memref_squeeze %72 : memref<1x!tpu.dma_semaphore, #tpu.memory_space<semaphore_mem>> -> memref<!tpu.dma_semaphore, #tpu.memory_space<semaphore_mem>>
      tpu.enqueue_dma source(%70 : memref<1x128xf32, #tpu.memory_space<any>>) target(%71 : memref<1x128xf32, #tpu.memory_space<vmem>>) target_semaphore(%73 : memref<!tpu.dma_semaphore, #tpu.memory_space<semaphore_mem>>)
      %c4 = arith.constant 4 : index
      %74 = memref.load %arg1[%c4] : memref<8xi32, #tpu.memory_space<smem>>
      %c4_i32 = arith.constant 4 : i32
      %c0_i32_42 = arith.constant 0 : i32
      %75 = tpu.memref_slice %arg2[%74, %c0_i32_42] : memref<4096x128xf32, #tpu.memory_space<any>> -> memref<1x128xf32, #tpu.memory_space<any>>
      %c4_i32_43 = arith.constant 4 : i32
      %c0_i32_44 = arith.constant 0 : i32
      %76 = tpu.memref_slice %arg10[%c4_i32_43, %c0_i32_44] : memref<8x128xf32, #tpu.memory_space<vmem>> -> memref<1x128xf32, #tpu.memory_space<vmem>>
      %77 = tpu.memref_slice %arg11[%c4_i32] : memref<8x!tpu.dma_semaphore, #tpu.memory_space<semaphore_mem>> -> memref<1x!tpu.dma_semaphore, #tpu.memory_space<semaphore_mem>>
      %78 = tpu.memref_squeeze %77 : memref<1x!tpu.dma_semaphore, #tpu.memory_space<semaphore_mem>> -> memref<!tpu.dma_semaphore, #tpu.memory_space<semaphore_mem>>
      tpu.enqueue_dma source(%75 : memref<1x128xf32, #tpu.memory_space<any>>) target(%76 : memref<1x128xf32, #tpu.memory_space<vmem>>) target_semaphore(%78 : memref<!tpu.dma_semaphore, #tpu.memory_space<semaphore_mem>>)
      %c5 = arith.constant 5 : index
      %79 = memref.load %arg1[%c5] : memref<8xi32, #tpu.memory_space<smem>>
      %c5_i32 = arith.constant 5 : i32
      %c0_i32_45 = arith.constant 0 : i32
      %80 = tpu.memref_slice %arg2[%79, %c0_i32_45] : memref<4096x128xf32, #tpu.memory_space<any>> -> memref<1x128xf32, #tpu.memory_space<any>>
      %c5_i32_46 = arith.constant 5 : i32
      %c0_i32_47 = arith.constant 0 : i32
      %81 = tpu.memref_slice %arg10[%c5_i32_46, %c0_i32_47] : memref<8x128xf32, #tpu.memory_space<vmem>> -> memref<1x128xf32, #tpu.memory_space<vmem>>
      %82 = tpu.memref_slice %arg11[%c5_i32] : memref<8x!tpu.dma_semaphore, #tpu.memory_space<semaphore_mem>> -> memref<1x!tpu.dma_semaphore, #tpu.memory_space<semaphore_mem>>
      %83 = tpu.memref_squeeze %82 : memref<1x!tpu.dma_semaphore, #tpu.memory_space<semaphore_mem>> -> memref<!tpu.dma_semaphore, #tpu.memory_space<semaphore_mem>>
      tpu.enqueue_dma source(%80 : memref<1x128xf32, #tpu.memory_space<any>>) target(%81 : memref<1x128xf32, #tpu.memory_space<vmem>>) target_semaphore(%83 : memref<!tpu.dma_semaphore, #tpu.memory_space<semaphore_mem>>)
      %c6 = arith.constant 6 : index
      %84 = memref.load %arg1[%c6] : memref<8xi32, #tpu.memory_space<smem>>
      %c6_i32 = arith.constant 6 : i32
      %c0_i32_48 = arith.constant 0 : i32
      %85 = tpu.memref_slice %arg2[%84, %c0_i32_48] : memref<4096x128xf32, #tpu.memory_space<any>> -> memref<1x128xf32, #tpu.memory_space<any>>
      %c6_i32_49 = arith.constant 6 : i32
      %c0_i32_50 = arith.constant 0 : i32
      %86 = tpu.memref_slice %arg10[%c6_i32_49, %c0_i32_50] : memref<8x128xf32, #tpu.memory_space<vmem>> -> memref<1x128xf32, #tpu.memory_space<vmem>>
      %87 = tpu.memref_slice %arg11[%c6_i32] : memref<8x!tpu.dma_semaphore, #tpu.memory_space<semaphore_mem>> -> memref<1x!tpu.dma_semaphore, #tpu.memory_space<semaphore_mem>>
      %88 = tpu.memref_squeeze %87 : memref<1x!tpu.dma_semaphore, #tpu.memory_space<semaphore_mem>> -> memref<!tpu.dma_semaphore, #tpu.memory_space<semaphore_mem>>
      tpu.enqueue_dma source(%85 : memref<1x128xf32, #tpu.memory_space<any>>) target(%86 : memref<1x128xf32, #tpu.memory_space<vmem>>) target_semaphore(%88 : memref<!tpu.dma_semaphore, #tpu.memory_space<semaphore_mem>>)
      %c7 = arith.constant 7 : index
      %89 = memref.load %arg1[%c7] : memref<8xi32, #tpu.memory_space<smem>>
      %c7_i32 = arith.constant 7 : i32
      %c0_i32_51 = arith.constant 0 : i32
      %90 = tpu.memref_slice %arg2[%89, %c0_i32_51] : memref<4096x128xf32, #tpu.memory_space<any>> -> memref<1x128xf32, #tpu.memory_space<any>>
      %c7_i32_52 = arith.constant 7 : i32
      %c0_i32_53 = arith.constant 0 : i32
      %91 = tpu.memref_slice %arg10[%c7_i32_52, %c0_i32_53] : memref<8x128xf32, #tpu.memory_space<vmem>> -> memref<1x128xf32, #tpu.memory_space<vmem>>
      %92 = tpu.memref_slice %arg11[%c7_i32] : memref<8x!tpu.dma_semaphore, #tpu.memory_space<semaphore_mem>> -> memref<1x!tpu.dma_semaphore, #tpu.memory_space<semaphore_mem>>
      %93 = tpu.memref_squeeze %92 : memref<1x!tpu.dma_semaphore, #tpu.memory_space<semaphore_mem>> -> memref<!tpu.dma_semaphore, #tpu.memory_space<semaphore_mem>>
      tpu.enqueue_dma source(%90 : memref<1x128xf32, #tpu.memory_space<any>>) target(%91 : memref<1x128xf32, #tpu.memory_space<vmem>>) target_semaphore(%93 : memref<!tpu.dma_semaphore, #tpu.memory_space<semaphore_mem>>)
      %c0_54 = arith.constant 0 : index
      %94 = memref.load %arg1[%c0_54] : memref<8xi32, #tpu.memory_space<smem>>
      %c0_i32_55 = arith.constant 0 : i32
      %c0_i32_56 = arith.constant 0 : i32
      %95 = tpu.memref_slice %arg2[%94, %c0_i32_56] : memref<4096x128xf32, #tpu.memory_space<any>> -> memref<1x128xf32, #tpu.memory_space<any>>
      %c0_i32_57 = arith.constant 0 : i32
      %c0_i32_58 = arith.constant 0 : i32
      %96 = tpu.memref_slice %arg10[%c0_i32_57, %c0_i32_58] : memref<8x128xf32, #tpu.memory_space<vmem>> -> memref<1x128xf32, #tpu.memory_space<vmem>>
      %97 = tpu.memref_slice %arg11[%c0_i32_55] : memref<8x!tpu.dma_semaphore, #tpu.memory_space<semaphore_mem>> -> memref<1x!tpu.dma_semaphore, #tpu.memory_space<semaphore_mem>>
      %98 = tpu.memref_squeeze %97 : memref<1x!tpu.dma_semaphore, #tpu.memory_space<semaphore_mem>> -> memref<!tpu.dma_semaphore, #tpu.memory_space<semaphore_mem>>
      tpu.wait_dma2 semaphore(%98 : memref<!tpu.dma_semaphore, #tpu.memory_space<semaphore_mem>>) src(%95 : memref<1x128xf32, #tpu.memory_space<any>>) dst(%96 : memref<1x128xf32, #tpu.memory_space<vmem>>)
      %c1_59 = arith.constant 1 : index
      %99 = memref.load %arg1[%c1_59] : memref<8xi32, #tpu.memory_space<smem>>
      %c1_i32_60 = arith.constant 1 : i32
      %c0_i32_61 = arith.constant 0 : i32
      %100 = tpu.memref_slice %arg2[%99, %c0_i32_61] : memref<4096x128xf32, #tpu.memory_space<any>> -> memref<1x128xf32, #tpu.memory_space<any>>
      %c1_i32_62 = arith.constant 1 : i32
      %c0_i32_63 = arith.constant 0 : i32
      %101 = tpu.memref_slice %arg10[%c1_i32_62, %c0_i32_63] : memref<8x128xf32, #tpu.memory_space<vmem>> -> memref<1x128xf32, #tpu.memory_space<vmem>>
      %102 = tpu.memref_slice %arg11[%c1_i32_60] : memref<8x!tpu.dma_semaphore, #tpu.memory_space<semaphore_mem>> -> memref<1x!tpu.dma_semaphore, #tpu.memory_space<semaphore_mem>>
      %103 = tpu.memref_squeeze %102 : memref<1x!tpu.dma_semaphore, #tpu.memory_space<semaphore_mem>> -> memref<!tpu.dma_semaphore, #tpu.memory_space<semaphore_mem>>
      tpu.wait_dma2 semaphore(%103 : memref<!tpu.dma_semaphore, #tpu.memory_space<semaphore_mem>>) src(%100 : memref<1x128xf32, #tpu.memory_space<any>>) dst(%101 : memref<1x128xf32, #tpu.memory_space<vmem>>)
      %c2_64 = arith.constant 2 : index
      %104 = memref.load %arg1[%c2_64] : memref<8xi32, #tpu.memory_space<smem>>
      %c2_i32_65 = arith.constant 2 : i32
      %c0_i32_66 = arith.constant 0 : i32
      %105 = tpu.memref_slice %arg2[%104, %c0_i32_66] : memref<4096x128xf32, #tpu.memory_space<any>> -> memref<1x128xf32, #tpu.memory_space<any>>
      %c2_i32_67 = arith.constant 2 : i32
      %c0_i32_68 = arith.constant 0 : i32
      %106 = tpu.memref_slice %arg10[%c2_i32_67, %c0_i32_68] : memref<8x128xf32, #tpu.memory_space<vmem>> -> memref<1x128xf32, #tpu.memory_space<vmem>>
      %107 = tpu.memref_slice %arg11[%c2_i32_65] : memref<8x!tpu.dma_semaphore, #tpu.memory_space<semaphore_mem>> -> memref<1x!tpu.dma_semaphore, #tpu.memory_space<semaphore_mem>>
      %108 = tpu.memref_squeeze %107 : memref<1x!tpu.dma_semaphore, #tpu.memory_space<semaphore_mem>> -> memref<!tpu.dma_semaphore, #tpu.memory_space<semaphore_mem>>
      tpu.wait_dma2 semaphore(%108 : memref<!tpu.dma_semaphore, #tpu.memory_space<semaphore_mem>>) src(%105 : memref<1x128xf32, #tpu.memory_space<any>>) dst(%106 : memref<1x128xf32, #tpu.memory_space<vmem>>)
      %c3_69 = arith.constant 3 : index
      %109 = memref.load %arg1[%c3_69] : memref<8xi32, #tpu.memory_space<smem>>
      %c3_i32_70 = arith.constant 3 : i32
      %c0_i32_71 = arith.constant 0 : i32
      %110 = tpu.memref_slice %arg2[%109, %c0_i32_71] : memref<4096x128xf32, #tpu.memory_space<any>> -> memref<1x128xf32, #tpu.memory_space<any>>
      %c3_i32_72 = arith.constant 3 : i32
      %c0_i32_73 = arith.constant 0 : i32
      %111 = tpu.memref_slice %arg10[%c3_i32_72, %c0_i32_73] : memref<8x128xf32, #tpu.memory_space<vmem>> -> memref<1x128xf32, #tpu.memory_space<vmem>>
      %112 = tpu.memref_slice %arg11[%c3_i32_70] : memref<8x!tpu.dma_semaphore, #tpu.memory_space<semaphore_mem>> -> memref<1x!tpu.dma_semaphore, #tpu.memory_space<semaphore_mem>>
      %113 = tpu.memref_squeeze %112 : memref<1x!tpu.dma_semaphore, #tpu.memory_space<semaphore_mem>> -> memref<!tpu.dma_semaphore, #tpu.memory_space<semaphore_mem>>
      tpu.wait_dma2 semaphore(%113 : memref<!tpu.dma_semaphore, #tpu.memory_space<semaphore_mem>>) src(%110 : memref<1x128xf32, #tpu.memory_space<any>>) dst(%111 : memref<1x128xf32, #tpu.memory_space<vmem>>)
      %c4_74 = arith.constant 4 : index
      %114 = memref.load %arg1[%c4_74] : memref<8xi32, #tpu.memory_space<smem>>
      %c4_i32_75 = arith.constant 4 : i32
      %c0_i32_76 = arith.constant 0 : i32
      %115 = tpu.memref_slice %arg2[%114, %c0_i32_76] : memref<4096x128xf32, #tpu.memory_space<any>> -> memref<1x128xf32, #tpu.memory_space<any>>
      %c4_i32_77 = arith.constant 4 : i32
      %c0_i32_78 = arith.constant 0 : i32
      %116 = tpu.memref_slice %arg10[%c4_i32_77, %c0_i32_78] : memref<8x128xf32, #tpu.memory_space<vmem>> -> memref<1x128xf32, #tpu.memory_space<vmem>>
      %117 = tpu.memref_slice %arg11[%c4_i32_75] : memref<8x!tpu.dma_semaphore, #tpu.memory_space<semaphore_mem>> -> memref<1x!tpu.dma_semaphore, #tpu.memory_space<semaphore_mem>>
      %118 = tpu.memref_squeeze %117 : memref<1x!tpu.dma_semaphore, #tpu.memory_space<semaphore_mem>> -> memref<!tpu.dma_semaphore, #tpu.memory_space<semaphore_mem>>
      tpu.wait_dma2 semaphore(%118 : memref<!tpu.dma_semaphore, #tpu.memory_space<semaphore_mem>>) src(%115 : memref<1x128xf32, #tpu.memory_space<any>>) dst(%116 : memref<1x128xf32, #tpu.memory_space<vmem>>)
      %c5_79 = arith.constant 5 : index
      %119 = memref.load %arg1[%c5_79] : memref<8xi32, #tpu.memory_space<smem>>
      %c5_i32_80 = arith.constant 5 : i32
      %c0_i32_81 = arith.constant 0 : i32
      %120 = tpu.memref_slice %arg2[%119, %c0_i32_81] : memref<4096x128xf32, #tpu.memory_space<any>> -> memref<1x128xf32, #tpu.memory_space<any>>
      %c5_i32_82 = arith.constant 5 : i32
      %c0_i32_83 = arith.constant 0 : i32
      %121 = tpu.memref_slice %arg10[%c5_i32_82, %c0_i32_83] : memref<8x128xf32, #tpu.memory_space<vmem>> -> memref<1x128xf32, #tpu.memory_space<vmem>>
      %122 = tpu.memref_slice %arg11[%c5_i32_80] : memref<8x!tpu.dma_semaphore, #tpu.memory_space<semaphore_mem>> -> memref<1x!tpu.dma_semaphore, #tpu.memory_space<semaphore_mem>>
      %123 = tpu.memref_squeeze %122 : memref<1x!tpu.dma_semaphore, #tpu.memory_space<semaphore_mem>> -> memref<!tpu.dma_semaphore, #tpu.memory_space<semaphore_mem>>
      tpu.wait_dma2 semaphore(%123 : memref<!tpu.dma_semaphore, #tpu.memory_space<semaphore_mem>>) src(%120 : memref<1x128xf32, #tpu.memory_space<any>>) dst(%121 : memref<1x128xf32, #tpu.memory_space<vmem>>)
      %c6_84 = arith.constant 6 : index
      %124 = memref.load %arg1[%c6_84] : memref<8xi32, #tpu.memory_space<smem>>
      %c6_i32_85 = arith.constant 6 : i32
      %c0_i32_86 = arith.constant 0 : i32
      %125 = tpu.memref_slice %arg2[%124, %c0_i32_86] : memref<4096x128xf32, #tpu.memory_space<any>> -> memref<1x128xf32, #tpu.memory_space<any>>
      %c6_i32_87 = arith.constant 6 : i32
      %c0_i32_88 = arith.constant 0 : i32
      %126 = tpu.memref_slice %arg10[%c6_i32_87, %c0_i32_88] : memref<8x128xf32, #tpu.memory_space<vmem>> -> memref<1x128xf32, #tpu.memory_space<vmem>>
      %127 = tpu.memref_slice %arg11[%c6_i32_85] : memref<8x!tpu.dma_semaphore, #tpu.memory_space<semaphore_mem>> -> memref<1x!tpu.dma_semaphore, #tpu.memory_space<semaphore_mem>>
      %128 = tpu.memref_squeeze %127 : memref<1x!tpu.dma_semaphore, #tpu.memory_space<semaphore_mem>> -> memref<!tpu.dma_semaphore, #tpu.memory_space<semaphore_mem>>
      tpu.wait_dma2 semaphore(%128 : memref<!tpu.dma_semaphore, #tpu.memory_space<semaphore_mem>>) src(%125 : memref<1x128xf32, #tpu.memory_space<any>>) dst(%126 : memref<1x128xf32, #tpu.memory_space<vmem>>)
      %c7_89 = arith.constant 7 : index
      %129 = memref.load %arg1[%c7_89] : memref<8xi32, #tpu.memory_space<smem>>
      %c7_i32_90 = arith.constant 7 : i32
      %c0_i32_91 = arith.constant 0 : i32
      %130 = tpu.memref_slice %arg2[%129, %c0_i32_91] : memref<4096x128xf32, #tpu.memory_space<any>> -> memref<1x128xf32, #tpu.memory_space<any>>
      %c7_i32_92 = arith.constant 7 : i32
      %c0_i32_93 = arith.constant 0 : i32
      %131 = tpu.memref_slice %arg10[%c7_i32_92, %c0_i32_93] : memref<8x128xf32, #tpu.memory_space<vmem>> -> memref<1x128xf32, #tpu.memory_space<vmem>>
      %132 = tpu.memref_slice %arg11[%c7_i32_90] : memref<8x!tpu.dma_semaphore, #tpu.memory_space<semaphore_mem>> -> memref<1x!tpu.dma_semaphore, #tpu.memory_space<semaphore_mem>>
      %133 = tpu.memref_squeeze %132 : memref<1x!tpu.dma_semaphore, #tpu.memory_space<semaphore_mem>> -> memref<!tpu.dma_semaphore, #tpu.memory_space<semaphore_mem>>
      tpu.wait_dma2 semaphore(%133 : memref<!tpu.dma_semaphore, #tpu.memory_space<semaphore_mem>>) src(%130 : memref<1x128xf32, #tpu.memory_space<any>>) dst(%131 : memref<1x128xf32, #tpu.memory_space<vmem>>)
    } else {
    }
    %c0 = arith.constant 0 : index
    %c0_1 = arith.constant 0 : index
    %3 = vector.load %arg10[%c0, %c0_1] : memref<8x128xf32, #tpu.memory_space<vmem>>, vector<8x128xf32>
    %c0_2 = arith.constant 0 : index
    %c0_3 = arith.constant 0 : index
    %c0_4 = arith.constant 0 : index
    %4 = vector.load %arg3[%c0_2, %c0_3, %c0_4] : memref<1x8x128xf32, #tpu.memory_space<vmem>>, vector<1x8x128xf32>
    %5 = vector.shape_cast %4 : vector<1x8x128xf32> to vector<8x128xf32>
    %c0_5 = arith.constant 0 : index
    %c0_6 = arith.constant 0 : index
    %c0_7 = arith.constant 0 : index
    %6 = vector.load %arg4[%c0_5, %c0_6, %c0_7] : memref<1x128x384xbf16, #tpu.memory_space<vmem>>, vector<1x128x384xbf16>
    %7 = vector.shape_cast %6 : vector<1x128x384xbf16> to vector<128x384xbf16>
    %c0_8 = arith.constant 0 : index
    %c0_9 = arith.constant 0 : index
    %c0_10 = arith.constant 0 : index
    %8 = vector.load %arg5[%c0_8, %c0_9, %c0_10] : memref<1x128x384xbf16, #tpu.memory_space<vmem>>, vector<1x128x384xbf16>
    %9 = vector.shape_cast %8 : vector<1x128x384xbf16> to vector<128x384xbf16>
    %10 = arith.truncf %3 : vector<8x128xf32> to vector<8x128xbf16>
    %cst = arith.constant dense<0.000000e+00> : vector<8x384xf32>
    %11 = tpu.matmul %10, %7, %cst {dimension_numbers = #tpu.dot_dimension_numbers<[1], [0], [0], [1], [0, 0, 1, 1], [], []>} : vector<8x128xbf16>, vector<128x384xbf16>, vector<8x384xf32> -> vector<8x384xf32>
    %c0_11 = arith.constant 0 : index
    %c0_12 = arith.constant 0 : index
    %c0_13 = arith.constant 0 : index
    %12 = vector.load %arg6[%c0_11, %c0_12, %c0_13] : memref<1x1x384xf32, #tpu.memory_space<vmem>>, vector<1x1x384xf32>
    %13 = vector.shape_cast %12 : vector<1x1x384xf32> to vector<1x384xf32>
    %14 = vector.broadcast %13 : vector<1x384xf32> to vector<8x384xf32>
    %15 = arith.addf %11, %14 : vector<8x384xf32>
    %16 = arith.truncf %5 : vector<8x128xf32> to vector<8x128xbf16>
    %cst_14 = arith.constant dense<0.000000e+00> : vector<8x384xf32>
    %17 = tpu.matmul %16, %9, %cst_14 {dimension_numbers = #tpu.dot_dimension_numbers<[1], [0], [0], [1], [0, 0, 1, 1], [], []>} : vector<8x128xbf16>, vector<128x384xbf16>, vector<8x384xf32> -> vector<8x384xf32>
    %c0_15 = arith.constant 0 : index
    %c0_16 = arith.constant 0 : index
    %c0_17 = arith.constant 0 : index
    %18 = vector.load %arg7[%c0_15, %c0_16, %c0_17] : memref<1x1x384xf32, #tpu.memory_space<vmem>>, vector<1x1x384xf32>
    %19 = vector.shape_cast %18 : vector<1x1x384xf32> to vector<1x384xf32>
    %20 = vector.broadcast %19 : vector<1x384xf32> to vector<8x384xf32>
    %21 = arith.addf %17, %20 : vector<8x384xf32>
    %22 = vector.extract_strided_slice %15 {offsets = [0, 0], sizes = [8, 128], strides = [1, 1]} : vector<8x384xf32> to vector<8x128xf32>
    %23 = vector.extract_strided_slice %21 {offsets = [0, 0], sizes = [8, 128], strides = [1, 1]} : vector<8x384xf32> to vector<8x128xf32>
    %24 = arith.addf %22, %23 : vector<8x128xf32>
    %25 = arith.negf %24 : vector<8x128xf32>
    %26 = math.exp %25 : vector<8x128xf32>
    %cst_18 = arith.constant 1.000000e+00 : f32
    %27 = vector.broadcast %cst_18 : f32 to vector<8x128xf32>
    %28 = arith.addf %27, %26 : vector<8x128xf32>
    %29 = arith.divf %27, %28 : vector<8x128xf32>
    %30 = vector.extract_strided_slice %15 {offsets = [0, 128], sizes = [8, 128], strides = [1, 1]} : vector<8x384xf32> to vector<8x128xf32>
    %31 = vector.extract_strided_slice %21 {offsets = [0, 128], sizes = [8, 128], strides = [1, 1]} : vector<8x384xf32> to vector<8x128xf32>
    %32 = arith.addf %30, %31 : vector<8x128xf32>
    %33 = arith.negf %32 : vector<8x128xf32>
    %34 = math.exp %33 : vector<8x128xf32>
    %cst_19 = arith.constant 1.000000e+00 : f32
    %35 = vector.broadcast %cst_19 : f32 to vector<8x128xf32>
    %36 = arith.addf %35, %34 : vector<8x128xf32>
    %37 = arith.divf %35, %36 : vector<8x128xf32>
    %38 = vector.extract_strided_slice %15 {offsets = [0, 256], sizes = [8, 128], strides = [1, 1]} : vector<8x384xf32> to vector<8x128xf32>
    %39 = vector.extract_strided_slice %21 {offsets = [0, 256], sizes = [8, 128], strides = [1, 1]} : vector<8x384xf32> to vector<8x128xf32>
    %40 = arith.mulf %29, %39 : vector<8x128xf32>
    %41 = arith.addf %38, %40 : vector<8x128xf32>
    %42 = math.tanh %41 : vector<8x128xf32>
    %cst_20 = arith.constant 1.000000e+00 : f32
    %43 = vector.broadcast %cst_20 : f32 to vector<8x128xf32>
    %44 = arith.subf %43, %37 : vector<8x128xf32>
    %45 = arith.mulf %44, %42 : vector<8x128xf32>
    %46 = arith.mulf %37, %5 : vector<8x128xf32>
    %47 = arith.addf %45, %46 : vector<8x128xf32>
    %c0_21 = arith.constant 0 : index
    %c0_22 = arith.constant 0 : index
    %c0_23 = arith.constant 0 : index
    %48 = vector.load %arg8[%c0_21, %c0_22, %c0_23] : memref<1x8x128xf32, #tpu.memory_space<vmem>>, vector<1x8x128xf32>
    %49 = vector.shape_cast %48 : vector<1x8x128xf32> to vector<8x128xf32>
    %50 = vector.shape_cast %47 : vector<8x128xf32> to vector<1x8x128xf32>
    tpu.vector_store %arg8[%c0_21, %c0_22, %c0_23], %50 {strides = array<i32>} : memref<1x8x128xf32, #tpu.memory_space<vmem>>, vector<1x8x128xf32>,
    %51 = arith.truncf %47 : vector<8x128xf32> to vector<8x128xbf16>
    %c0_24 = arith.constant 0 : index
    %c0_25 = arith.constant 0 : index
    %52 = vector.load %arg9[%c0_24, %c0_25] : memref<8x128xbf16, #tpu.memory_space<vmem>>, vector<8x128xbf16>
    tpu.vector_store %arg9[%c0_24, %c0_25], %51 {strides = array<i32>} : memref<8x128xbf16, #tpu.memory_space<vmem>>, vector<8x128xbf16>,
    %c0_26 = arith.constant 0 : index
    %c0_27 = arith.constant 0 : index
    %53 = vector.load %arg10[%c0_26, %c0_27] : memref<8x128xf32, #tpu.memory_space<vmem>>, vector<8x128xf32>
    tpu.vector_store %arg10[%c0_26, %c0_27], %47 {strides = array<i32>} : memref<8x128xf32, #tpu.memory_space<vmem>>, vector<8x128xf32>,
    return
  }
  func.func @transform_1(%arg0: i32, %arg1: memref<8xi32, #tpu.memory_space<smem>>) -> (i32, i32, i32) {
    %c0_i32 = arith.constant 0 : i32
    %c0_i32_0 = arith.constant 0 : i32
    %c0_i32_1 = arith.constant 0 : i32
    return %arg0, %c0_i32, %c0_i32_0 : i32, i32, i32
  }
  func.func @transform_2(%arg0: i32, %arg1: memref<8xi32, #tpu.memory_space<smem>>) -> (i32, i32, i32) {
    %c0_i32 = arith.constant 0 : i32
    %c0_i32_0 = arith.constant 0 : i32
    %c0_i32_1 = arith.constant 0 : i32
    return %arg0, %c0_i32, %c0_i32_0 : i32, i32, i32
  }
  func.func @transform_3(%arg0: i32, %arg1: memref<8xi32, #tpu.memory_space<smem>>) -> (i32, i32, i32) {
    %c0_i32 = arith.constant 0 : i32
    %c0_i32_0 = arith.constant 0 : i32
    %c0_i32_1 = arith.constant 0 : i32
    return %arg0, %c0_i32, %c0_i32_0 : i32, i32, i32
  }
  func.func @transform_4(%arg0: i32, %arg1: memref<8xi32, #tpu.memory_space<smem>>) -> (i32, i32, i32) {
    %c0_i32 = arith.constant 0 : i32
    %c0_i32_0 = arith.constant 0 : i32
    %c0_i32_1 = arith.constant 0 : i32
    return %arg0, %c0_i32, %c0_i32_0 : i32, i32, i32
  }
  func.func @transform_5(%arg0: i32, %arg1: memref<8xi32, #tpu.memory_space<smem>>) -> (i32, i32, i32) {
    %c0_i32 = arith.constant 0 : i32
    %c0_i32_0 = arith.constant 0 : i32
    %c0_i32_1 = arith.constant 0 : i32
    return %arg0, %c0_i32, %c0_i32_0 : i32, i32, i32
  }
  func.func @transform_6(%arg0: i32, %arg1: memref<8xi32, #tpu.memory_space<smem>>) -> (i32, i32, i32) {
    %c0_i32 = arith.constant 0 : i32
    %c0_i32_0 = arith.constant 0 : i32
    %c0_i32_1 = arith.constant 0 : i32
    return %arg0, %c0_i32, %c0_i32_0 : i32, i32, i32
  }
  func.func @transform_7(%arg0: i32, %arg1: memref<8xi32, #tpu.memory_space<smem>>) -> (i32, i32) {
    %c0_i32 = arith.constant 0 : i32
    %c0_i32_0 = arith.constant 0 : i32
    %c0_i32_1 = arith.constant 0 : i32
    return %c0_i32, %c0_i32_0 : i32, i32
  }
}

</mosaic_0001>

<llo_original>
// kernel: tpu_custom_call.1
$region0: #{tpu_custom_call.1}
  #allocation0 [shape = 'u32[]', space=smem, size = 0x4, offset = 0x4, fixed_abs, tag = 'smem constant byte address 0x4 - core index']
  #allocation1 [shape = 'u32[144,128]{1,0:T(1,128)}', space=vmem, size = 0x12000, scoped, tag = 'internal scratch']
  #allocation2 [shape = 'f32[8,128]{1,0:T(8,128)}', space=vmem, size = 0x1000, scoped, tag = 'scratch operand']
  #allocation3 [shape = 's32[8]{0}', space=sflag, size = 0x20, scoped, tag = 'scratch operand']
  #allocation4 [shape = 's32[1]{0}', space=sflag, size = 0x4, scoped, tag = 'scoped memory for tpu_custom_call.1']
  #allocation5 [shape = 'u8[512]{0}', space=smem, size = 0x200, scoped, tag = 'prefetched SMEM operand 0']
  #allocation18 [shape = 's32[]', space=sflag, size = 0x4, offset = 0, fixed_abs, tag = 'sflag constant byte address 0x0 - dummy sync flag']
  #allocation19 [shape = 's32[]', space=sflag, size = 0x4, offset = 0, fixed_abs, tag = 'sflag constant byte address 0x0 - dummy sync flag']
  #allocation20 [shape = 'u32[]', space=smem, size = 0x4, offset = 0x44, fixed_abs, tag = 'smem constant byte address 0x44 - assertion arg 0']
  #allocation21 [shape = 'u32[]', space=smem, size = 0x4, offset = 0x48, fixed_abs, tag = 'smem constant byte address 0x48 - assertion arg 1']
  #allocation22 [shape = 's32[]', space=sflag, size = 0x4, offset = 0, fixed_abs, tag = 'sflag constant byte address 0x0 - dummy sync flag']
  #allocation23 [shape = 's32[]', space=sflag, size = 0x4, offset = 0, fixed_abs, tag = 'sflag constant byte address 0x0 - dummy sync flag']
  #allocation24 [shape = 's32[]', space=sflag, size = 0x4, offset = 0, fixed_abs, tag = 'sflag constant byte address 0x0 - dummy sync flag']
  #allocation25 [shape = 's32[]', space=sflag, size = 0x4, offset = 0, fixed_abs, tag = 'sflag constant byte address 0x0 - dummy sync flag']
  #allocation26 [shape = 's32[]', space=sflag, size = 0x4, offset = 0, fixed_abs, tag = 'sflag constant byte address 0x0 - dummy sync flag']
  #allocation27 [shape = 's32[]', space=sflag, size = 0x4, offset = 0, fixed_abs, tag = 'sflag constant byte address 0x0 - dummy sync flag']
  #allocation28 [shape = 's32[]', space=sflag, size = 0x4, offset = 0, fixed_abs, tag = 'sflag constant byte address 0x0 - dummy sync flag']
  #allocation29 [shape = 's32[]', space=sflag, size = 0x4, offset = 0, fixed_abs, tag = 'sflag constant byte address 0x0 - dummy sync flag']
  #allocation30 [shape = 's32[]', space=sflag, size = 0x4, offset = 0, fixed_abs, tag = 'sflag constant byte address 0x0 - dummy sync flag']
  #allocation31 [shape = 's32[]', space=sflag, size = 0x4, offset = 0, fixed_abs, tag = 'sflag constant byte address 0x0 - dummy sync flag']
  #allocation32 [shape = 's32[]', space=sflag, size = 0x4, offset = 0, fixed_abs, tag = 'sflag constant byte address 0x0 - dummy sync flag']
  #allocation33 [shape = 's32[]', space=sflag, size = 0x4, offset = 0, fixed_abs, tag = 'sflag constant byte address 0x0 - dummy sync flag']
  #allocation34 [shape = 's32[]', space=sflag, size = 0x4, offset = 0, fixed_abs, tag = 'sflag constant byte address 0x0 - dummy sync flag']
  #allocation35 [shape = 's32[]', space=sflag, size = 0x4, offset = 0, fixed_abs, tag = 'sflag constant byte address 0x0 - dummy sync flag']
  %s0 = inlined_call_operand.hbm [shape: s32[8], index: 0, kind: input, shape index: {}]
  %s1 = inlined_call_operand.hbm [shape: f32[4096,128], index: 1, kind: input, shape index: {}]
  %s2 = inlined_call_operand.hbm [shape: f32[2,8,128], index: 2, kind: input, shape index: {}]
  %s3 = inlined_call_operand.hbm [shape: bf16[2,128,384], index: 3, kind: input, shape index: {}]
  %s4 = inlined_call_operand.hbm [shape: bf16[2,128,384], index: 4, kind: input, shape index: {}]
  %s5 = inlined_call_operand.hbm [shape: f32[2,1,384], index: 5, kind: input, shape index: {}]
  %s6 = inlined_call_operand.hbm [shape: f32[2,1,384], index: 6, kind: input, shape index: {}]
  %s7 = inlined_call_operand.hbm [shape: f32[2,8,128], index: 7, kind: output, shape index: {0}]
  %s8 = inlined_call_operand.hbm [shape: bf16[8,128], index: 8, kind: output, shape index: {1}]
  %9 = xla_tuple %s7, %s8
  %s10 = sld [smem:[#allocation0]]
  $region117: #{tpu_custom_call.1} parent=0
    _
  %s12 = ssub.s32 1, %s10
  %s13 = scalar_select 0, %s12, %s10
  %15 = dma.hbm_to_smem %s0, 16, [#allocation5], [#allocation4]
  %16 = dma.done [#allocation4], 16
  %17 = sfence
  $region1: #{tpu_custom_call.1} parent=0
    #allocation6 [shape = 'u8[8192]{0}', space=vmem, size = 0x2000, scoped, tag = 'input window, operand 2']
    #allocation7 [shape = 's32[2]{0}', space=sflag, size = 0x8, scoped, tag = 'scoped memory for tpu_custom_call.1']
    #allocation8 [shape = 's32[2]{0}', space=sflag, size = 0x8, scoped, tag = 'scoped memory for tpu_custom_call.1']
    #allocation9 [shape = 'u8[196608]{0}', space=vmem, size = 0x30000, scoped, tag = 'input window, operand 3']
    #allocation10 [shape = 's32[2]{0}', space=sflag, size = 0x8, scoped, tag = 'scoped memory for tpu_custom_call.1']
    #allocation11 [shape = 'u8[196608]{0}', space=vmem, size = 0x30000, scoped, tag = 'input window, operand 4']
    #allocation12 [shape = 'u8[3072]{0}', space=vmem, size = 0xc00, scoped, tag = 'input window, operand 5']
    #allocation13 [shape = 's32[2]{0}', space=sflag, size = 0x8, scoped, tag = 'scoped memory for tpu_custom_call.1']
    #allocation14 [shape = 'u8[3072]{0}', space=vmem, size = 0xc00, scoped, tag = 'input window, operand 6']
    #allocation15 [shape = 'u8[8192]{0}', space=vmem, size = 0x2000, scoped, tag = 'output window, operand 0']
    #allocation16 [shape = 'u8[2048]{0}', space=vmem, size = 0x800, scoped, tag = 'output window, operand 1, single buffered']
    #allocation17 [shape = 's32[1]{0}', space=sflag, size = 0x4, scoped, tag = 'scoped memory for tpu_custom_call.1']
    %18 = vsyncpa [#allocation7], 0
    %s19 = scalar_lea.sflag [#allocation7], 1
    %20 = vsyncpa %s19, 0
    %21 = vsyncpa [#allocation10], 0
    %s22 = scalar_lea.sflag [#allocation10], 1
    %23 = vsyncpa %s22, 0
    %24 = vsyncpa [#allocation13], 0
    %s25 = scalar_lea.sflag [#allocation13], 1
    %26 = vsyncpa %s25, 0
    %27 = vsyncpa [#allocation8], 0
    %s28 = scalar_lea.sflag [#allocation8], 1
    %29 = vsyncpa %s28, 0
    %30 = vsyncpa [#allocation17], 0
    loop: start=0, step=1, limit=4
    $region2: #{tpu_custom_call.1} parent=1 // loop_pre_header
      _
    $region3: #{tpu_custom_call.1} parent=1 // loop_header
      %s32 = sphi 0, %s36
      %p33 = scmp.ge.s32.totalorder %s32, 4
      %s42 = sphi 0, %s44
      %s45 = sphi 0, %s42
      %s46 = sphi 0, %s45
      %s62 = sphi 0, %s46
      %s68 = sphi 0, %s70
      %s71 = sphi 0, %s68
      %s72 = sphi 0, %s71
      %s88 = sphi 0, %s72
      %s94 = sphi 0, %s96
      %s97 = sphi 0, %s94
      %s98 = sphi 0, %s97
      %s114 = sphi 0, %s98
      %s120 = sphi 0, %s122
      %s123 = sphi 0, %s120
      %s124 = sphi 0, %s123
      %s140 = sphi 0, %s124
      %s146 = sphi 0, %s148
      %s149 = sphi 0, %s146
      %s150 = sphi 0, %s149
      %s166 = sphi 0, %s150
      %s172 = sphi 0, %s174
      %s175 = sphi 0, %s172
      %s176 = sphi 0, %s175
      %s192 = sphi 0, %s176
      %s196 = sphi 0, %s196
      %s198 = sphi 0, %s196
      %s199 = sphi 0, %s198
      %s213 = sphi 0, %s199
    $region4: #{tpu_custom_call.1} parent=1 // loop_header_branch
      %35 = sbr.rel (%p33) target = $region8
    $region5: #{tpu_custom_call.1} parent=1 // loop_body
      %s37 = ssub.s32 %s32, 1
      %s38 = ssub.s32 %s32, 2
      %s39 = sadd.s32 %s32, 1
      %s40 = ssub.s32 %s32, %s39
      %p41 = scmp.eq.s32.totalorder %s40, 0
      %s43 = sadd.s32 %s42, 1
      %s44 = scalar_select %p41, %s42, %s43
      %p47 = pneg %p41
      %p48 = scmp.eq.s32.totalorder %s32, 1
      %p49 = por %p47, %p48
      %p50 = scmp.ne.s32.totalorder %s42, %s45
      %p51 = scmp.eq.s32.totalorder %s32, 0
      %p52 = por %p50, %p51
      %p53 = scmp.ne.s32.totalorder %s42, %s45
      %p54 = scmp.eq.s32.totalorder %s37, 1
      %p55 = por %p53, %p54
      %p56 = scmp.ne.s32.totalorder %s45, %s46
      %p57 = scmp.eq.s32.totalorder %s37, 0
      %p58 = por %p56, %p57
      %p59 = scmp.ne.s32.totalorder %s45, %s46
      %p60 = scmp.eq.s32.totalorder %s38, 1
      %p61 = por %p59, %p60
      %p63 = scmp.ne.s32.totalorder %s46, %s62
      %p64 = scmp.eq.s32.totalorder %s38, 0
      %p65 = por %p63, %p64
      %s66 = ssub.s32 %s32, %s39
      %p67 = scmp.eq.s32.totalorder %s66, 0
      %s69 = sadd.s32 %s68, 1
      %s70 = scalar_select %p67, %s68, %s69
      %p73 = pneg %p67
      %p74 = scmp.eq.s32.totalorder %s32, 1
      %p75 = por %p73, %p74
      %p76 = scmp.ne.s32.totalorder %s68, %s71
      %p77 = scmp.eq.s32.totalorder %s32, 0
      %p78 = por %p76, %p77
      %p79 = scmp.ne.s32.totalorder %s68, %s71
      %p80 = scmp.eq.s32.totalorder %s37, 1
      %p81 = por %p79, %p80
      %p82 = scmp.ne.s32.totalorder %s71, %s72
      %p83 = scmp.eq.s32.totalorder %s37, 0
      %p84 = por %p82, %p83
      %p85 = scmp.ne.s32.totalorder %s71, %s72
      %p86 = scmp.eq.s32.totalorder %s38, 1
      %p87 = por %p85, %p86
      %p89 = scmp.ne.s32.totalorder %s72, %s88
      %p90 = scmp.eq.s32.totalorder %s38, 0
      %p91 = por %p89, %p90
      %s92 = ssub.s32 %s32, %s39
      %p93 = scmp.eq.s32.totalorder %s92, 0
      %s95 = sadd.s32 %s94, 1
      %s96 = scalar_select %p93, %s94, %s95
      %p99 = pneg %p93
      %p100 = scmp.eq.s32.totalorder %s32, 1
      %p101 = por %p99, %p100
      %p102 = scmp.ne.s32.totalorder %s94, %s97
      %p103 = scmp.eq.s32.totalorder %s32, 0
      %p104 = por %p102, %p103
      %p105 = scmp.ne.s32.totalorder %s94, %s97
      %p106 = scmp.eq.s32.totalorder %s37, 1
      %p107 = por %p105, %p106
      %p108 = scmp.ne.s32.totalorder %s97, %s98
      %p109 = scmp.eq.s32.totalorder %s37, 0
      %p110 = por %p108, %p109
      %p111 = scmp.ne.s32.totalorder %s97, %s98
      %p112 = scmp.eq.s32.totalorder %s38, 1
      %p113 = por %p111, %p112
      %p115 = scmp.ne.s32.totalorder %s98, %s114
      %p116 = scmp.eq.s32.totalorder %s38, 0
      %p117 = por %p115, %p116
      %s118 = ssub.s32 %s32, %s39
      %p119 = scmp.eq.s32.totalorder %s118, 0
      %s121 = sadd.s32 %s120, 1
      %s122 = scalar_select %p119, %s120, %s121
      %p125 = pneg %p119
      %p126 = scmp.eq.s32.totalorder %s32, 1
      %p127 = por %p125, %p126
      %p128 = scmp.ne.s32.totalorder %s120, %s123
      %p129 = scmp.eq.s32.totalorder %s32, 0
      %p130 = por %p128, %p129
      %p131 = scmp.ne.s32.totalorder %s120, %s123
      %p132 = scmp.eq.s32.totalorder %s37, 1
      %p133 = por %p131, %p132
      %p134 = scmp.ne.s32.totalorder %s123, %s124
      %p135 = scmp.eq.s32.totalorder %s37, 0
      %p136 = por %p134, %p135
      %p137 = scmp.ne.s32.totalorder %s123, %s124
      %p138 = scmp.eq.s32.totalorder %s38, 1
      %p139 = por %p137, %p138
      %p141 = scmp.ne.s32.totalorder %s124, %s140
      %p142 = scmp.eq.s32.totalorder %s38, 0
      %p143 = por %p141, %p142
      %s144 = ssub.s32 %s32, %s39
      %p145 = scmp.eq.s32.totalorder %s144, 0
      %s147 = sadd.s32 %s146, 1
      %s148 = scalar_select %p145, %s146, %s147
      %p151 = pneg %p145
      %p152 = scmp.eq.s32.totalorder %s32, 1
      %p153 = por %p151, %p152
      %p154 = scmp.ne.s32.totalorder %s146, %s149
      %p155 = scmp.eq.s32.totalorder %s32, 0
      %p156 = por %p154, %p155
      %p157 = scmp.ne.s32.totalorder %s146, %s149
      %p158 = scmp.eq.s32.totalorder %s37, 1
      %p159 = por %p157, %p158
      %p160 = scmp.ne.s32.totalorder %s149, %s150
      %p161 = scmp.eq.s32.totalorder %s37, 0
      %p162 = por %p160, %p161
      %p163 = scmp.ne.s32.totalorder %s149, %s150
      %p164 = scmp.eq.s32.totalorder %s38, 1
      %p165 = por %p163, %p164
      %p167 = scmp.ne.s32.totalorder %s150, %s166
      %p168 = scmp.eq.s32.totalorder %s38, 0
      %p169 = por %p167, %p168
      %s170 = ssub.s32 %s32, %s39
      %p171 = scmp.eq.s32.totalorder %s170, 0
      %s173 = sadd.s32 %s172, 1
      %s174 = scalar_select %p171, %s172, %s173
      %p177 = pneg %p171
      %p178 = scmp.eq.s32.totalorder %s32, 1
      %p179 = por %p177, %p178
      %p180 = scmp.ne.s32.totalorder %s172, %s175
      %p181 = scmp.eq.s32.totalorder %s32, 0
      %p182 = por %p180, %p181
      %p183 = scmp.ne.s32.totalorder %s172, %s175
      %p184 = scmp.eq.s32.totalorder %s37, 1
      %p185 = por %p183, %p184
      %p186 = scmp.ne.s32.totalorder %s175, %s176
      %p187 = scmp.eq.s32.totalorder %s37, 0
      %p188 = por %p186, %p187
      %p189 = scmp.ne.s32.totalorder %s175, %s176
      %p190 = scmp.eq.s32.totalorder %s38, 1
      %p191 = por %p189, %p190
      %p193 = scmp.ne.s32.totalorder %s176, %s192
      %p194 = scmp.eq.s32.totalorder %s38, 0
      %p195 = por %p193, %p194
      %s197 = sadd.s32 %s196, 1
      %p200 = scmp.eq.s32.totalorder %s32, 1
      %p201 = scmp.ne.s32.totalorder %s196, %s198
      %p202 = scmp.eq.s32.totalorder %s32, 0
      %p203 = por %p201, %p202
      %p204 = scmp.ne.s32.totalorder %s196, %s198
      %p205 = scmp.eq.s32.totalorder %s37, 1
      %p206 = por %p204, %p205
      %p207 = scmp.ne.s32.totalorder %s198, %s199
      %p208 = scmp.eq.s32.totalorder %s37, 0
      %p209 = por %p207, %p208
      %p210 = scmp.ne.s32.totalorder %s198, %s199
      %p211 = scmp.eq.s32.totalorder %s38, 1
      %p212 = por %p210, %p211
      %p214 = scmp.ne.s32.totalorder %s199, %s213
      %p215 = scmp.eq.s32.totalorder %s38, 0
      %p216 = por %p214, %p215
      %p217 = scmp.le.s32.totalorder 1, %s32
      %p218 = scmp.lt.s32.totalorder %s32, 3
      %p219 = pnand %p217, %p218
      %p220 = pneg %p219
      // Predicated region
      $region9: #{tpu_custom_call.1} parent=5 // pred_check
        _
      $region10: #{tpu_custom_call.1} parent=5 // pred_check_branch
        %222 = sbr.rel (%p219) target = $region12
      $region11: #{tpu_custom_call.1} parent=5 // pred_region
        %s223 = ssub.s32 %s32, 1
      $region12: #{tpu_custom_call.1} parent=5 // pred_fallthru
        _
      %p224 = scmp.lt.s32.totalorder %s32, 2
      // Predicated region
      $region13: #{tpu_custom_call.1} parent=5 // pred_check
        %p225 = pneg %p224
      $region14: #{tpu_custom_call.1} parent=5 // pred_check_branch
        %227 = sbr.rel (%p225) target = $region16
      $region15: #{tpu_custom_call.1} parent=5 // pred_region
        // Predicated region
        $region17: #{tpu_custom_call.1} parent=15 // pred_check
          %p228 = pneg %p52
        $region18: #{tpu_custom_call.1} parent=15 // pred_check_branch
          %230 = sbr.rel (%p228) target = $region20
        $region19: #{tpu_custom_call.1} parent=15 // pred_region
          %s231 = sand.u32 %s42, 1
          %s232 = scalar_lea.sflag [#allocation7], %s231
          %s233 = sand.u32 %s42, 1
          %s234 = smul.addr %s233, 8
          %s235 = scalar_lea.vmem [#allocation6], %s234
          %s237 = ssub.s32 128, 128
          %238 = vsyncadd %s232, %s237
          %s239 = smul.addr %s32, 128
          %s240 = scalar_lea.hbm %s2, %s239
          %s242 = sshll.u32 %s235, 4
          %s243 = int_to_ptr.vmem [resolvable:$true] %s242
          %245 = dma.hbm_to_vmem [thread:$0]  %s240, 128, %s243, %s232
        $region20: #{tpu_custom_call.1} parent=15 // pred_fallthru
          _
        // Predicated region
        $region21: #{tpu_custom_call.1} parent=15 // pred_check
          %p246 = pneg %p78
        $region22: #{tpu_custom_call.1} parent=15 // pred_check_branch
          %248 = sbr.rel (%p246) target = $region24
        $region23: #{tpu_custom_call.1} parent=15 // pred_region
          %s249 = sand.u32 %s32, 1
          %s250 = scalar_lea.sflag [#allocation10], %s249
          %s251 = sand.u32 %s68, 1
          %s252 = smul.addr %s251, 192
          %s253 = scalar_lea.vmem [#allocation9], %s252
          %s255 = ssub.s32 3072, 3072
          %256 = vsyncadd %s250, %s255
          %s257 = smul.addr %s32, 48
          %s258 = smul.addr %s257, 64
          %s259 = scalar_lea.hbm %s3, %s258
          %s260 = sshll.u32 %s253, 4
          %s261 = int_to_ptr.vmem [resolvable:$true] %s260
          %266 = dma.hbm_to_vmem [thread:$0]  %s259, 3072, %s261, %s250, 192, 192, 12
        $region24: #{tpu_custom_call.1} parent=15 // pred_fallthru
          _
        // Predicated region
        $region25: #{tpu_custom_call.1} parent=15 // pred_check
          %p267 = pneg %p104
        $region26: #{tpu_custom_call.1} parent=15 // pred_check_branch
          %269 = sbr.rel (%p267) target = $region28
        $region27: #{tpu_custom_call.1} parent=15 // pred_region
          %s270 = sand.u32 %s32, 1
          %s271 = scalar_lea.sflag [#allocation10], %s270
          %s272 = sand.u32 %s94, 1
          %s273 = smul.addr %s272, 192
          %s274 = scalar_lea.vmem [#allocation11], %s273
          %s276 = ssub.s32 3072, 3072
          %277 = vsyncadd %s271, %s276
          %s278 = smul.addr %s32, 48
          %s279 = smul.addr %s278, 64
          %s280 = scalar_lea.hbm %s4, %s279
          %s281 = sshll.u32 %s274, 4
          %s282 = int_to_ptr.vmem [resolvable:$true] %s281
          %287 = dma.hbm_to_vmem [thread:$0]  %s280, 3072, %s282, %s271, 192, 192, 12
        $region28: #{tpu_custom_call.1} parent=15 // pred_fallthru
          _
        // Predicated region
        $region29: #{tpu_custom_call.1} parent=15 // pred_check
          %p288 = pneg %p130
        $region30: #{tpu_custom_call.1} parent=15 // pred_check_branch
          %290 = sbr.rel (%p288) target = $region32
        $region31: #{tpu_custom_call.1} parent=15 // pred_region
          %s291 = sand.u32 %s32, 1
          %s292 = scalar_lea.sflag [#allocation13], %s291
          %s293 = sand.u32 %s120, 1
          %s294 = smul.addr %s293, 3
          %s295 = scalar_lea.vmem [#allocation12], %s294
          %s297 = ssub.s32 48, 48
          %298 = vsyncadd %s292, %s297
          %s299 = smul.addr %s32, 3
          %s300 = smul.addr %s299, 16
          %s301 = scalar_lea.hbm %s5, %s300
          %s303 = sshll.u32 %s295, 4
          %s304 = int_to_ptr.vmem [resolvable:$true] %s303
          %306 = dma.hbm_to_vmem [thread:$0]  %s301, 48, %s304, %s292
        $region32: #{tpu_custom_call.1} parent=15 // pred_fallthru
          _
        // Predicated region
        $region33: #{tpu_custom_call.1} parent=15 // pred_check
          %p307 = pneg %p156
        $region34: #{tpu_custom_call.1} parent=15 // pred_check_branch
          %309 = sbr.rel (%p307) target = $region36
        $region35: #{tpu_custom_call.1} parent=15 // pred_region
          %s310 = sand.u32 %s32, 1
          %s311 = scalar_lea.sflag [#allocation13], %s310
          %s312 = sand.u32 %s146, 1
          %s313 = smul.addr %s312, 3
          %s314 = scalar_lea.vmem [#allocation14], %s313
          %s316 = ssub.s32 48, 48
          %317 = vsyncadd %s311, %s316
          %s318 = smul.addr %s32, 3
          %s319 = smul.addr %s318, 16
          %s320 = scalar_lea.hbm %s6, %s319
          %s322 = sshll.u32 %s314, 4
          %s323 = int_to_ptr.vmem [resolvable:$true] %s322
          %325 = dma.hbm_to_vmem [thread:$0]  %s320, 48, %s323, %s311
        $region36: #{tpu_custom_call.1} parent=15 // pred_fallthru
          _
      $region16: #{tpu_custom_call.1} parent=5 // pred_fallthru
        _
      %p326 = scmp.le.s32.totalorder 1, %s32
      %p327 = scmp.lt.s32.totalorder %s32, 3
      %p328 = pnand %p326, %p327
      %p329 = pneg %p328
      // Predicated region
      $region37: #{tpu_custom_call.1} parent=5 // pred_check
        _
      $region38: #{tpu_custom_call.1} parent=5 // pred_check_branch
        %331 = sbr.rel (%p328) target = $region40
      $region39: #{tpu_custom_call.1} parent=5 // pred_region
        %s332 = ssub.s32 %s32, 1
        %s333 = sand.u32 %s45, 1
        %s334 = scalar_lea.sflag [#allocation7], %s333
        %s335 = sand.u32 %s45, 1
        %s336 = smul.addr %s335, 8
        %s337 = scalar_lea.vmem [#allocation6], %s336
        // Predicated region
        $region41: #{tpu_custom_call.1} parent=39 // pred_check
          %p338 = pneg %p58
        $region42: #{tpu_custom_call.1} parent=39 // pred_check_branch
          %340 = sbr.rel (%p338) target = $region44
        $region43: #{tpu_custom_call.1} parent=39 // pred_region
          %341 = dma.done %s334, 128
        $region44: #{tpu_custom_call.1} parent=39 // pred_fallthru
          _
        %s342 = sand.u32 %s37, 1
        %s343 = scalar_lea.sflag [#allocation10], %s342
        %s344 = sand.u32 %s71, 1
        %s345 = smul.addr %s344, 192
        %s346 = scalar_lea.vmem [#allocation9], %s345
        // Predicated region
        $region45: #{tpu_custom_call.1} parent=39 // pred_check
          %p347 = pneg %p84
        $region46: #{tpu_custom_call.1} parent=39 // pred_check_branch
          %349 = sbr.rel (%p347) target = $region48
        $region47: #{tpu_custom_call.1} parent=39 // pred_region
          %350 = dma.done %s343, 3072
        $region48: #{tpu_custom_call.1} parent=39 // pred_fallthru
          _
        %s351 = sand.u32 %s37, 1
        %s352 = scalar_lea.sflag [#allocation10], %s351
        %s353 = sand.u32 %s97, 1
        %s354 = smul.addr %s353, 192
        %s355 = scalar_lea.vmem [#allocation11], %s354
        // Predicated region
        $region49: #{tpu_custom_call.1} parent=39 // pred_check
          %p356 = pneg %p110
        $region50: #{tpu_custom_call.1} parent=39 // pred_check_branch
          %358 = sbr.rel (%p356) target = $region52
        $region51: #{tpu_custom_call.1} parent=39 // pred_region
          %359 = dma.done %s352, 3072
        $region52: #{tpu_custom_call.1} parent=39 // pred_fallthru
          _
        %s360 = sand.u32 %s37, 1
        %s361 = scalar_lea.sflag [#allocation13], %s360
        %s362 = sand.u32 %s123, 1
        %s363 = smul.addr %s362, 3
        %s364 = scalar_lea.vmem [#allocation12], %s363
        // Predicated region
        $region53: #{tpu_custom_call.1} parent=39 // pred_check
          %p365 = pneg %p136
        $region54: #{tpu_custom_call.1} parent=39 // pred_check_branch
          %367 = sbr.rel (%p365) target = $region56
        $region55: #{tpu_custom_call.1} parent=39 // pred_region
          %368 = dma.done %s361, 48
        $region56: #{tpu_custom_call.1} parent=39 // pred_fallthru
          _
        %s369 = sand.u32 %s37, 1
        %s370 = scalar_lea.sflag [#allocation13], %s369
        %s371 = sand.u32 %s149, 1
        %s372 = smul.addr %s371, 3
        %s373 = scalar_lea.vmem [#allocation14], %s372
        // Predicated region
        $region57: #{tpu_custom_call.1} parent=39 // pred_check
          %p374 = pneg %p162
        $region58: #{tpu_custom_call.1} parent=39 // pred_check_branch
          %376 = sbr.rel (%p374) target = $region60
        $region59: #{tpu_custom_call.1} parent=39 // pred_region
          %377 = dma.done %s370, 48
        $region60: #{tpu_custom_call.1} parent=39 // pred_fallthru
          _
        %s378 = sand.u32 %s45, 1
        %s379 = scalar_lea.sflag [#allocation7], %s378
        %s380 = sand.u32 %s45, 1
        %s381 = smul.addr %s380, 8
        %s382 = scalar_lea.vmem [#allocation6], %s381
        %p383 = pneg %p58
        %p384 = pneg %p55
        %s385 = sand.u32 %s37, 1
        %s386 = scalar_lea.sflag [#allocation10], %s385
        %s387 = sand.u32 %s71, 1
        %s388 = smul.addr %s387, 192
        %s389 = scalar_lea.vmem [#allocation9], %s388
        %p390 = pneg %p84
        %p391 = pneg %p81
        %s392 = sand.u32 %s37, 1
        %s393 = scalar_lea.sflag [#allocation10], %s392
        %s394 = sand.u32 %s97, 1
        %s395 = smul.addr %s394, 192
        %s396 = scalar_lea.vmem [#allocation11], %s395
        %p397 = pneg %p110
        %p398 = pneg %p107
        %s399 = sand.u32 %s37, 1
        %s400 = scalar_lea.sflag [#allocation13], %s399
        %s401 = sand.u32 %s123, 1
        %s402 = smul.addr %s401, 3
        %s403 = scalar_lea.vmem [#allocation12], %s402
        %p404 = pneg %p136
        %p405 = pneg %p133
        %s406 = sand.u32 %s37, 1
        %s407 = scalar_lea.sflag [#allocation13], %s406
        %s408 = sand.u32 %s149, 1
        %s409 = smul.addr %s408, 3
        %s410 = scalar_lea.vmem [#allocation14], %s409
        %p411 = pneg %p162
        %p412 = pneg %p159
        %p413 = pneg %p188
        %p414 = pneg %p185
        %s415 = sand.u32 %s175, 1
        %s416 = scalar_lea.sflag [#allocation8], %s415
        %s417 = sand.u32 %s175, 1
        %s418 = smul.addr %s417, 8
        %s419 = scalar_lea.vmem [#allocation15], %s418
        %p420 = pneg %p209
        %p421 = pneg %p206
        %p423 = scmp.eq.s32.totalorder %s37, 0
        // Predicated region
        $region61: #{tpu_custom_call.1} parent=39 // pred_check
          %p424 = pneg %p423
        $region62: #{tpu_custom_call.1} parent=39 // pred_check_branch
          %426 = sbr.rel (%p424) target = $region64
        $region63: #{tpu_custom_call.1} parent=39 // pred_region
          %s427 = sld [smem:[#allocation5]]
          %s428 = smul.addr %s427, 16
          %s429 = scalar_lea.hbm %s1, %s428
          // Predicated region
          $region65: #{tpu_custom_call.1} parent=63 // pred_check
            _
          $region66: #{tpu_custom_call.1} parent=63 // pred_check_branch
            %431 = sbr.rel target = $region68
          $region67: #{tpu_custom_call.1} parent=63 // pred_region
            %432 = sst [smem:[#allocation20]] [#allocation19]
            %433 = sst [smem:[#allocation21]] [#allocation18]
          $region68: #{tpu_custom_call.1} parent=63 // pred_fallthru
            _
          %435 = shalt.err (0)
          %s437 = sshll.u32 [#allocation2], 4
          %s438 = int_to_ptr.vmem [resolvable:$true] %s437
          %440 = dma.hbm_to_vmem [thread:$0]  %s429, 16, %s438, [#allocation3]
          %s441 = sld [smem:[#allocation5 + $0x1]]
          %s442 = smul.addr %s441, 16
          %s443 = scalar_lea.hbm %s1, %s442
          %s444 = scalar_lea.vmem [#allocation2], 1
          %s445 = scalar_lea.sflag [#allocation3], 1
          // Predicated region
          $region69: #{tpu_custom_call.1} parent=63 // pred_check
            _
          $region70: #{tpu_custom_call.1} parent=63 // pred_check_branch
            %447 = sbr.rel target = $region72
          $region71: #{tpu_custom_call.1} parent=63 // pred_region
            %448 = sst [smem:[#allocation20]] [#allocation23]
            %449 = sst [smem:[#allocation21]] [#allocation22]
          $region72: #{tpu_custom_call.1} parent=63 // pred_fallthru
            _
          %451 = shalt.err (0)
          %s453 = sshll.u32 %s444, 4
          %s454 = int_to_ptr.vmem [resolvable:$true] %s453
          %456 = dma.hbm_to_vmem [thread:$0]  %s443, 16, %s454, %s445
          %s457 = sld [smem:[#allocation5 + $0x2]]
          %s458 = smul.addr %s457, 16
          %s459 = scalar_lea.hbm %s1, %s458
          %s460 = scalar_lea.vmem [#allocation2], 2
          %s461 = scalar_lea.sflag [#allocation3], 2
          // Predicated region
          $region73: #{tpu_custom_call.1} parent=63 // pred_check
            _
          $region74: #{tpu_custom_call.1} parent=63 // pred_check_branch
            %463 = sbr.rel target = $region76
          $region75: #{tpu_custom_call.1} parent=63 // pred_region
            %464 = sst [smem:[#allocation20]] [#allocation25]
            %465 = sst [smem:[#allocation21]] [#allocation24]
          $region76: #{tpu_custom_call.1} parent=63 // pred_fallthru
            _
          %467 = shalt.err (0)
          %s469 = sshll.u32 %s460, 4
          %s470 = int_to_ptr.vmem [resolvable:$true] %s469
          %472 = dma.hbm_to_vmem [thread:$0]  %s459, 16, %s470, %s461
          %s473 = sld [smem:[#allocation5 + $0x3]]
          %s474 = smul.addr %s473, 16
          %s475 = scalar_lea.hbm %s1, %s474
          %s476 = scalar_lea.vmem [#allocation2], 3
          %s477 = scalar_lea.sflag [#allocation3], 3
          // Predicated region
          $region77: #{tpu_custom_call.1} parent=63 // pred_check
            _
          $region78: #{tpu_custom_call.1} parent=63 // pred_check_branch
            %479 = sbr.rel target = $region80
          $region79: #{tpu_custom_call.1} parent=63 // pred_region
            %480 = sst [smem:[#allocation20]] [#allocation27]
            %481 = sst [smem:[#allocation21]] [#allocation26]
          $region80: #{tpu_custom_call.1} parent=63 // pred_fallthru
            _
          %483 = shalt.err (0)
          %s485 = sshll.u32 %s476, 4
          %s486 = int_to_ptr.vmem [resolvable:$true] %s485
          %488 = dma.hbm_to_vmem [thread:$0]  %s475, 16, %s486, %s477
          %s489 = sld [smem:[#allocation5 + $0x4]]
          %s490 = smul.addr %s489, 16
          %s491 = scalar_lea.hbm %s1, %s490
          %s492 = scalar_lea.vmem [#allocation2], 4
          %s493 = scalar_lea.sflag [#allocation3], 4
          // Predicated region
          $region81: #{tpu_custom_call.1} parent=63 // pred_check
            _
          $region82: #{tpu_custom_call.1} parent=63 // pred_check_branch
            %495 = sbr.rel target = $region84
          $region83: #{tpu_custom_call.1} parent=63 // pred_region
            %496 = sst [smem:[#allocation20]] [#allocation29]
            %497 = sst [smem:[#allocation21]] [#allocation28]
          $region84: #{tpu_custom_call.1} parent=63 // pred_fallthru
            _
          %499 = shalt.err (0)
          %s501 = sshll.u32 %s492, 4
          %s502 = int_to_ptr.vmem [resolvable:$true] %s501
          %504 = dma.hbm_to_vmem [thread:$0]  %s491, 16, %s502, %s493
          %s505 = sld [smem:[#allocation5 + $0x5]]
          %s506 = smul.addr %s505, 16
          %s507 = scalar_lea.hbm %s1, %s506
          %s508 = scalar_lea.vmem [#allocation2], 5
          %s509 = scalar_lea.sflag [#allocation3], 5
          // Predicated region
          $region85: #{tpu_custom_call.1} parent=63 // pred_check
            _
          $region86: #{tpu_custom_call.1} parent=63 // pred_check_branch
            %511 = sbr.rel target = $region88
          $region87: #{tpu_custom_call.1} parent=63 // pred_region
            %512 = sst [smem:[#allocation20]] [#allocation31]
            %513 = sst [smem:[#allocation21]] [#allocation30]
          $region88: #{tpu_custom_call.1} parent=63 // pred_fallthru
            _
          %515 = shalt.err (0)
          %s517 = sshll.u32 %s508, 4
          %s518 = int_to_ptr.vmem [resolvable:$true] %s517
          %520 = dma.hbm_to_vmem [thread:$0]  %s507, 16, %s518, %s509
          %s521 = sld [smem:[#allocation5 + $0x6]]
          %s522 = smul.addr %s521, 16
          %s523 = scalar_lea.hbm %s1, %s522
          %s524 = scalar_lea.vmem [#allocation2], 6
          %s525 = scalar_lea.sflag [#allocation3], 6
          // Predicated region
          $region89: #{tpu_custom_call.1} parent=63 // pred_check
            _
          $region90: #{tpu_custom_call.1} parent=63 // pred_check_branch
            %527 = sbr.rel target = $region92
          $region91: #{tpu_custom_call.1} parent=63 // pred_region
            %528 = sst [smem:[#allocation20]] [#allocation33]
            %529 = sst [smem:[#allocation21]] [#allocation32]
          $region92: #{tpu_custom_call.1} parent=63 // pred_fallthru
            _
          %531 = shalt.err (0)
          %s533 = sshll.u32 %s524, 4
          %s534 = int_to_ptr.vmem [resolvable:$true] %s533
          %536 = dma.hbm_to_vmem [thread:$0]  %s523, 16, %s534, %s525
          %s537 = sld [smem:[#allocation5 + $0x7]]
          %s538 = smul.addr %s537, 16
          %s539 = scalar_lea.hbm %s1, %s538
          %s540 = scalar_lea.vmem [#allocation2], 7
          %s541 = scalar_lea.sflag [#allocation3], 7
          // Predicated region
          $region93: #{tpu_custom_call.1} parent=63 // pred_check
            _
          $region94: #{tpu_custom_call.1} parent=63 // pred_check_branch
            %543 = sbr.rel target = $region96
          $region95: #{tpu_custom_call.1} parent=63 // pred_region
            %544 = sst [smem:[#allocation20]] [#allocation35]
            %545 = sst [smem:[#allocation21]] [#allocation34]
          $region96: #{tpu_custom_call.1} parent=63 // pred_fallthru
            _
          %547 = shalt.err (0)
          %s549 = sshll.u32 %s540, 4
          %s550 = int_to_ptr.vmem [resolvable:$true] %s549
          %552 = dma.hbm_to_vmem [thread:$0]  %s539, 16, %s550, %s541
          %s553 = sld [smem:[#allocation5]]
          %s554 = smul.u32 1, 1
          %s555 = sshll.u32 %s554, 4
          %556 = dma.done [#allocation3], %s555
          %s557 = sld [smem:[#allocation5 + $0x1]]
          %s558 = sshll.u32 %s554, 4
          %559 = dma.done %s445, %s558
          %s560 = sld [smem:[#allocation5 + $0x2]]
          %s561 = sshll.u32 %s554, 4
          %562 = dma.done %s461, %s561
          %s563 = sld [smem:[#allocation5 + $0x3]]
          %s564 = sshll.u32 %s554, 4
          %565 = dma.done %s477, %s564
          %s566 = sld [smem:[#allocation5 + $0x4]]
          %s567 = sshll.u32 %s554, 4
          %568 = dma.done %s493, %s567
          %s569 = sld [smem:[#allocation5 + $0x5]]
          %s570 = sshll.u32 %s554, 4
          %571 = dma.done %s509, %s570
          %s572 = sld [smem:[#allocation5 + $0x6]]
          %s573 = sshll.u32 %s554, 4
          %574 = dma.done %s525, %s573
          %s575 = sld [smem:[#allocation5 + $0x7]]
          %s576 = sshll.u32 %s554, 4
          %577 = dma.done %s541, %s576
        $region64: #{tpu_custom_call.1} parent=39 // pred_fallthru
          _
        %v578 = vld [vmem:[#allocation2] sm:$0xff]
        %v579 = vld [vmem:[%s337] sm:$0xff]
        %v580 = vld [vmem:[%s346] sm:$0xff]
        %v581 = vld [vmem:[%s346 + $0x8] sm:$0xf]
        %v582 = vld [vmem:[%s346 + $0xc] sm:$0xff]
        %v583 = vld [vmem:[%s346 + $0x14] sm:$0xf]
        %v584 = vld [vmem:[%s346 + $0x18] sm:$0xff]
        %v585 = vld [vmem:[%s346 + $0x20] sm:$0xf]
        %v586 = vld [vmem:[%s346 + $0x24] sm:$0xff]
        %v587 = vld [vmem:[%s346 + $0x2c] sm:$0xf]
        %v588 = vld [vmem:[%s346 + $0x30] sm:$0xff]
        %v589 = vld [vmem:[%s346 + $0x38] sm:$0xf]
        %v590 = vld [vmem:[%s346 + $0x3c] sm:$0xff]
        %v591 = vld [vmem:[%s346 + $0x44] sm:$0xf]
        %v592 = vld [vmem:[%s346 + $0x48] sm:$0xff]
        %v593 = vld [vmem:[%s346 + $0x50] sm:$0xf]
        %v594 = vld [vmem:[%s346 + $0x54] sm:$0xff]
        %v595 = vld [vmem:[%s346 + $0x5c] sm:$0xf]
        %v596 = vld [vmem:[%s346 + $0x60] sm:$0xff]
        %v597 = vld [vmem:[%s346 + $0x68] sm:$0xf]
        %v598 = vld [vmem:[%s346 + $0x6c] sm:$0xff]
        %v599 = vld [vmem:[%s346 + $0x74] sm:$0xf]
        %v600 = vld [vmem:[%s346 + $0x78] sm:$0xff]
        %v601 = vld [vmem:[%s346 + $0x80] sm:$0xf]
        %v602 = vld [vmem:[%s346 + $0x84] sm:$0xff]
        %v603 = vld [vmem:[%s346 + $0x8c] sm:$0xf]
        %v604 = vld [vmem:[%s346 + $0x90] sm:$0xff]
        %v605 = vld [vmem:[%s346 + $0x98] sm:$0xf]
        %v606 = vld [vmem:[%s346 + $0x9c] sm:$0xff]
        %v607 = vld [vmem:[%s346 + $0xa4] sm:$0xf]
        %v608 = vld [vmem:[%s346 + $0xa8] sm:$0xff]
        %v609 = vld [vmem:[%s346 + $0xb0] sm:$0xf]
        %v610 = vld [vmem:[%s346 + $0xb4] sm:$0xff]
        %v611 = vld [vmem:[%s346 + $0xbc] sm:$0xf]
        %v612 = vld [vmem:[%s355] sm:$0xff]
        %v613 = vld [vmem:[%s355 + $0x8] sm:$0xf]
        %v614 = vld [vmem:[%s355 + $0xc] sm:$0xff]
        %v615 = vld [vmem:[%s355 + $0x14] sm:$0xf]
        %v616 = vld [vmem:[%s355 + $0x18] sm:$0xff]
        %v617 = vld [vmem:[%s355 + $0x20] sm:$0xf]
        %v618 = vld [vmem:[%s355 + $0x24] sm:$0xff]
        %v619 = vld [vmem:[%s355 + $0x2c] sm:$0xf]
        %v620 = vld [vmem:[%s355 + $0x30] sm:$0xff]
        %v621 = vld [vmem:[%s355 + $0x38] sm:$0xf]
        %v622 = vld [vmem:[%s355 + $0x3c] sm:$0xff]
        %v623 = vld [vmem:[%s355 + $0x44] sm:$0xf]
        %v624 = vld [vmem:[%s355 + $0x48] sm:$0xff]
        %v625 = vld [vmem:[%s355 + $0x50] sm:$0xf]
        %v626 = vld [vmem:[%s355 + $0x54] sm:$0xff]
        %v627 = vld [vmem:[%s355 + $0x5c] sm:$0xf]
        %v628 = vld [vmem:[%s355 + $0x60] sm:$0xff]
        %v629 = vld [vmem:[%s355 + $0x68] sm:$0xf]
        %v630 = vld [vmem:[%s355 + $0x6c] sm:$0xff]
        %v631 = vld [vmem:[%s355 + $0x74] sm:$0xf]
        %v632 = vld [vmem:[%s355 + $0x78] sm:$0xff]
        %v633 = vld [vmem:[%s355 + $0x80] sm:$0xf]
        %v634 = vld [vmem:[%s355 + $0x84] sm:$0xff]
        %v635 = vld [vmem:[%s355 + $0x8c] sm:$0xf]
        %v636 = vld [vmem:[%s355 + $0x90] sm:$0xff]
        %v637 = vld [vmem:[%s355 + $0x98] sm:$0xf]
        %v638 = vld [vmem:[%s355 + $0x9c] sm:$0xff]
        %v639 = vld [vmem:[%s355 + $0xa4] sm:$0xf]
        %v640 = vld [vmem:[%s355 + $0xa8] sm:$0xff]
        %v641 = vld [vmem:[%s355 + $0xb0] sm:$0xf]
        %v642 = vld [vmem:[%s355 + $0xb4] sm:$0xff]
        %v643 = vld [vmem:[%s355 + $0xbc] sm:$0xf]
        %v644 = vpack.c.bf16 %v578, %v578
        %v645 = vld [vmem:[%s364] sm:$0x7]
        %v647 = vlaneseq
        %v648 = vshrl.u32 %v647, 7
        %v649 = vsub.s32 0, %v648
        %v650 = vrot.slane %v645, %v649
        %v651 = vlaneseq
        %v652 = vshrl.u32 %v651, 7
        %v653 = vsub.s32 1, %v652
        %v654 = vrot.slane %v645, %v653
        %v655 = vlaneseq
        %v656 = vshrl.u32 %v655, 7
        %v657 = vsub.s32 2, %v656
        %v658 = vrot.slane %v645, %v657
        %v694 = vunpack.c.l.b16 %v580
        %v695 = vunpack.c.h.b16 %v580
        %v696 = vunpack.c.l.b16 %v581
        %v697 = vunpack.c.l.b16 %v582
        %v698 = vunpack.c.h.b16 %v582
        %v699 = vunpack.c.l.b16 %v583
        %v700 = vunpack.c.l.b16 %v584
        %v701 = vunpack.c.h.b16 %v584
        %v702 = vunpack.c.l.b16 %v585
        %v703 = vunpack.c.l.b16 %v586
        %v704 = vunpack.c.h.b16 %v586
        %v705 = vunpack.c.l.b16 %v587
        %v706 = vunpack.c.l.b16 %v588
        %v707 = vunpack.c.h.b16 %v588
        %v708 = vunpack.c.l.b16 %v589
        %v709 = vunpack.c.l.b16 %v590
        %v710 = vunpack.c.h.b16 %v590
        %v711 = vunpack.c.l.b16 %v591
        %v712 = vunpack.c.l.b16 %v592
        %v713 = vunpack.c.h.b16 %v592
        %v714 = vunpack.c.l.b16 %v593
        %v715 = vunpack.c.l.b16 %v594
        %v716 = vunpack.c.h.b16 %v594
        %v717 = vunpack.c.l.b16 %v595
        %v718 = vunpack.c.l.b16 %v596
        %v719 = vunpack.c.h.b16 %v596
        %v720 = vunpack.c.l.b16 %v597
        %v721 = vunpack.c.l.b16 %v598
        %v722 = vunpack.c.h.b16 %v598
        %v723 = vunpack.c.l.b16 %v599
        %v724 = vunpack.c.l.b16 %v600
        %v725 = vunpack.c.h.b16 %v600
        %v726 = vunpack.c.l.b16 %v601
        %v727 = vunpack.c.l.b16 %v602
        %v728 = vunpack.c.h.b16 %v602
        %v729 = vunpack.c.l.b16 %v603
        %v730 = vunpack.c.l.b16 %v604
        %v731 = vunpack.c.h.b16 %v604
        %v732 = vunpack.c.l.b16 %v605
        %v733 = vunpack.c.l.b16 %v606
        %v734 = vunpack.c.h.b16 %v606
        %v735 = vunpack.c.l.b16 %v607
        %v736 = vunpack.c.l.b16 %v608
        %v737 = vunpack.c.h.b16 %v608
        %v738 = vunpack.c.l.b16 %v609
        %v739 = vunpack.c.l.b16 %v610
        %v740 = vunpack.c.h.b16 %v610
        %v741 = vunpack.c.l.b16 %v611
        %v742 = vpack.c.b16 %v697, %v694
        %v743 = vpack.c.b16 %v698, %v695
        %v744 = vpack.c.b16 %v699, %v696
        %v745 = vpack.c.b16 %v703, %v700
        %v746 = vpack.c.b16 %v704, %v701
        %v747 = vpack.c.b16 %v705, %v702
        %v748 = vpack.c.b16 %v709, %v706
        %v749 = vpack.c.b16 %v710, %v707
        %v750 = vpack.c.b16 %v711, %v708
        %v751 = vpack.c.b16 %v715, %v712
        %v752 = vpack.c.b16 %v716, %v713
        %v753 = vpack.c.b16 %v717, %v714
        %v754 = vpack.c.b16 %v721, %v718
        %v755 = vpack.c.b16 %v722, %v719
        %v756 = vpack.c.b16 %v723, %v720
        %v757 = vpack.c.b16 %v727, %v724
        %v758 = vpack.c.b16 %v728, %v725
        %v759 = vpack.c.b16 %v729, %v726
        %v760 = vpack.c.b16 %v733, %v730
        %v761 = vpack.c.b16 %v734, %v731
        %v762 = vpack.c.b16 %v735, %v732
        %v763 = vpack.c.b16 %v739, %v736
        %v764 = vpack.c.b16 %v740, %v737
        %v765 = vpack.c.b16 %v741, %v738
        %790 = vmatprep.subr.bf16.mxu0 %v764
        %791 = vmatpush1.bf16.msra.mxu0 %v763
        %792 = vmatprep.subr.bf16.mxu0 %v761
        %793 = vmatpush1.bf16.msra.mxu0 %v760
        %794 = vmatprep.subr.bf16.mxu0 %v758
        %795 = vmatpush1.bf16.msra.mxu0 %v757
        %796 = vmatprep.subr.bf16.mxu0 %v755
        %797 = vmatpush1.bf16.msra.mxu0 %v754
        %798 = vmatprep.subr.bf16.mxu0 %v752
        %799 = vmatpush1.bf16.msra.mxu0 %v751
        %800 = vmatprep.subr.bf16.mxu0 %v749
        %801 = vmatpush1.bf16.msra.mxu0 %v748
        %802 = vmatprep.subr.bf16.mxu0 %v746
        %803 = vmatpush1.bf16.msra.mxu0 %v745
        %804 = vmatprep.subr.bf16.mxu0 %v743
        %805 = vmatpush1.bf16.msra.mxu0 %v742
        %806 = vmatprep.subr.bf16.mxu0 0
        %807 = vmatpush2.bf16.msra.mxu0 0
        %808 = vmatprep.subr.bf16.mxu0 0
        %809 = vmatpush2.bf16.msra.mxu0 0
        %810 = vmatprep.subr.bf16.mxu0 0
        %811 = vmatpush2.bf16.msra.mxu0 0
        %812 = vmatprep.subr.bf16.mxu0 0
        %813 = vmatpush2.bf16.msra.mxu0 0
        %814 = vmatprep.subr.bf16.mxu0 0
        %815 = vmatpush2.bf16.msra.mxu0 0
        %816 = vmatprep.subr.bf16.mxu0 0
        %817 = vmatpush2.bf16.msra.mxu0 0
        %818 = vmatprep.subr.bf16.mxu0 0
        %819 = vmatpush2.bf16.msra.mxu0 0
        %820 = vmatprep.subr.bf16.mxu0 0
        %821 = vmatpush2.bf16.msra.mxu0 0
        %822 = vmatprep.mubr.bf16.mxu0 0
        %823 = vmatmul.mubr.bf16.gmra.mxu0 %v644
        %v824 = vpop.f32.mrf.mxu0
        %v825 = vadd.f32 %v650, %v824
        %v826 = vpop.f32.mrf.mxu0
        %v827 = vadd.f32 %v654, %v826
        %v828 = vpop.f32.mrf.mxu0
        %v829 = vpop.f32.mrf.mxu0
        %830 = vdwg.mxu0
        %831 = vmatprep.subr.bf16.mxu0 0
        %832 = vmatpush1.bf16.msra.mxu0 %v765
        %833 = vmatprep.subr.bf16.mxu0 0
        %834 = vmatpush1.bf16.msra.mxu0 %v762
        %835 = vmatprep.subr.bf16.mxu0 0
        %836 = vmatpush1.bf16.msra.mxu0 %v759
        %837 = vmatprep.subr.bf16.mxu0 0
        %838 = vmatpush1.bf16.msra.mxu0 %v756
        %839 = vmatprep.subr.bf16.mxu0 0
        %840 = vmatpush1.bf16.msra.mxu0 %v753
        %841 = vmatprep.subr.bf16.mxu0 0
        %842 = vmatpush1.bf16.msra.mxu0 %v750
        %843 = vmatprep.subr.bf16.mxu0 0
        %844 = vmatpush1.bf16.msra.mxu0 %v747
        %845 = vmatprep.subr.bf16.mxu0 0
        %846 = vmatpush1.bf16.msra.mxu0 %v744
        %847 = vmatprep.subr.bf16.mxu0 0
        %848 = vmatpush2.bf16.msra.mxu0 0
        %849 = vmatprep.subr.bf16.mxu0 0
        %850 = vmatpush2.bf16.msra.mxu0 0
        %851 = vmatprep.subr.bf16.mxu0 0
        %852 = vmatpush2.bf16.msra.mxu0 0
        %853 = vmatprep.subr.bf16.mxu0 0
        %854 = vmatpush2.bf16.msra.mxu0 0
        %855 = vmatprep.subr.bf16.mxu0 0
        %856 = vmatpush2.bf16.msra.mxu0 0
        %857 = vmatprep.subr.bf16.mxu0 0
        %858 = vmatpush2.bf16.msra.mxu0 0
        %859 = vmatprep.subr.bf16.mxu0 0
        %860 = vmatpush2.bf16.msra.mxu0 0
        %861 = vmatprep.subr.bf16.mxu0 0
        %862 = vmatpush2.bf16.msra.mxu0 0
        %863 = vmatprep.mubr.bf16.mxu0 0
        %864 = vmatmul.mubr.bf16.gmra.mxu0 %v644
        %v865 = vpop.f32.mrf.mxu0
        %v866 = vadd.f32 %v658, %v865
        %v867 = vpop.f32.mrf.mxu0
        %v868 = vpop.f32.mrf.mxu0
        %v869 = vpop.f32.mrf.mxu0
        %870 = vdwg.mxu0
        %v871 = vpack.c.bf16 %v579, %v579
        %v872 = vld [vmem:[%s373] sm:$0x7]
        %v874 = vlaneseq
        %v875 = vshrl.u32 %v874, 7
        %v876 = vsub.s32 0, %v875
        %v877 = vrot.slane %v872, %v876
        %v878 = vlaneseq
        %v879 = vshrl.u32 %v878, 7
        %v880 = vsub.s32 1, %v879
        %v881 = vrot.slane %v872, %v880
        %v882 = vlaneseq
        %v883 = vshrl.u32 %v882, 7
        %v884 = vsub.s32 2, %v883
        %v885 = vrot.slane %v872, %v884
        %v921 = vunpack.c.l.b16 %v612
        %v922 = vunpack.c.h.b16 %v612
        %v923 = vunpack.c.l.b16 %v613
        %v924 = vunpack.c.l.b16 %v614
        %v925 = vunpack.c.h.b16 %v614
        %v926 = vunpack.c.l.b16 %v615
        %v927 = vunpack.c.l.b16 %v616
        %v928 = vunpack.c.h.b16 %v616
        %v929 = vunpack.c.l.b16 %v617
        %v930 = vunpack.c.l.b16 %v618
        %v931 = vunpack.c.h.b16 %v618
        %v932 = vunpack.c.l.b16 %v619
        %v933 = vunpack.c.l.b16 %v620
        %v934 = vunpack.c.h.b16 %v620
        %v935 = vunpack.c.l.b16 %v621
        %v936 = vunpack.c.l.b16 %v622
        %v937 = vunpack.c.h.b16 %v622
        %v938 = vunpack.c.l.b16 %v623
        %v939 = vunpack.c.l.b16 %v624
        %v940 = vunpack.c.h.b16 %v624
        %v941 = vunpack.c.l.b16 %v625
        %v942 = vunpack.c.l.b16 %v626
        %v943 = vunpack.c.h.b16 %v626
        %v944 = vunpack.c.l.b16 %v627
        %v945 = vunpack.c.l.b16 %v628
        %v946 = vunpack.c.h.b16 %v628
        %v947 = vunpack.c.l.b16 %v629
        %v948 = vunpack.c.l.b16 %v630
        %v949 = vunpack.c.h.b16 %v630
        %v950 = vunpack.c.l.b16 %v631
        %v951 = vunpack.c.l.b16 %v632
        %v952 = vunpack.c.h.b16 %v632
        %v953 = vunpack.c.l.b16 %v633
        %v954 = vunpack.c.l.b16 %v634
        %v955 = vunpack.c.h.b16 %v634
        %v956 = vunpack.c.l.b16 %v635
        %v957 = vunpack.c.l.b16 %v636
        %v958 = vunpack.c.h.b16 %v636
        %v959 = vunpack.c.l.b16 %v637
        %v960 = vunpack.c.l.b16 %v638
        %v961 = vunpack.c.h.b16 %v638
        %v962 = vunpack.c.l.b16 %v639
        %v963 = vunpack.c.l.b16 %v640
        %v964 = vunpack.c.h.b16 %v640
        %v965 = vunpack.c.l.b16 %v641
        %v966 = vunpack.c.l.b16 %v642
        %v967 = vunpack.c.h.b16 %v642
        %v968 = vunpack.c.l.b16 %v643
        %v969 = vpack.c.b16 %v924, %v921
        %v970 = vpack.c.b16 %v925, %v922
        %v971 = vpack.c.b16 %v926, %v923
        %v972 = vpack.c.b16 %v930, %v927
        %v973 = vpack.c.b16 %v931, %v928
        %v974 = vpack.c.b16 %v932, %v929
        %v975 = vpack.c.b16 %v936, %v933
        %v976 = vpack.c.b16 %v937, %v934
        %v977 = vpack.c.b16 %v938, %v935
        %v978 = vpack.c.b16 %v942, %v939
        %v979 = vpack.c.b16 %v943, %v940
        %v980 = vpack.c.b16 %v944, %v941
        %v981 = vpack.c.b16 %v948, %v945
        %v982 = vpack.c.b16 %v949, %v946
        %v983 = vpack.c.b16 %v950, %v947
        %v984 = vpack.c.b16 %v954, %v951
        %v985 = vpack.c.b16 %v955, %v952
        %v986 = vpack.c.b16 %v956, %v953
        %v987 = vpack.c.b16 %v960, %v957
        %v988 = vpack.c.b16 %v961, %v958
        %v989 = vpack.c.b16 %v962, %v959
        %v990 = vpack.c.b16 %v966, %v963
        %v991 = vpack.c.b16 %v967, %v964
        %v992 = vpack.c.b16 %v968, %v965
        %1017 = vmatprep.subr.bf16.mxu0 %v991
        %1018 = vmatpush1.bf16.msra.mxu0 %v990
        %1019 = vmatprep.subr.bf16.mxu0 %v988
        %1020 = vmatpush1.bf16.msra.mxu0 %v987
        %1021 = vmatprep.subr.bf16.mxu0 %v985
        %1022 = vmatpush1.bf16.msra.mxu0 %v984
        %1023 = vmatprep.subr.bf16.mxu0 %v982
        %1024 = vmatpush1.bf16.msra.mxu0 %v981
        %1025 = vmatprep.subr.bf16.mxu0 %v979
        %1026 = vmatpush1.bf16.msra.mxu0 %v978
        %1027 = vmatprep.subr.bf16.mxu0 %v976
        %1028 = vmatpush1.bf16.msra.mxu0 %v975
        %1029 = vmatprep.subr.bf16.mxu0 %v973
        %1030 = vmatpush1.bf16.msra.mxu0 %v972
        %1031 = vmatprep.subr.bf16.mxu0 %v970
        %1032 = vmatpush1.bf16.msra.mxu0 %v969
        %1033 = vmatprep.subr.bf16.mxu0 0
        %1034 = vmatpush2.bf16.msra.mxu0 0
        %1035 = vmatprep.subr.bf16.mxu0 0
        %1036 = vmatpush2.bf16.msra.mxu0 0
        %1037 = vmatprep.subr.bf16.mxu0 0
        %1038 = vmatpush2.bf16.msra.mxu0 0
        %1039 = vmatprep.subr.bf16.mxu0 0
        %1040 = vmatpush2.bf16.msra.mxu0 0
        %1041 = vmatprep.subr.bf16.mxu0 0
        %1042 = vmatpush2.bf16.msra.mxu0 0
        %1043 = vmatprep.subr.bf16.mxu0 0
        %1044 = vmatpush2.bf16.msra.mxu0 0
        %1045 = vmatprep.subr.bf16.mxu0 0
        %1046 = vmatpush2.bf16.msra.mxu0 0
        %1047 = vmatprep.subr.bf16.mxu0 0
        %1048 = vmatpush2.bf16.msra.mxu0 0
        %1049 = vmatprep.mubr.bf16.mxu0 0
        %1050 = vmatmul.mubr.bf16.gmra.mxu0 %v871
        %v1051 = vpop.f32.mrf.mxu0
        %v1052 = vadd.f32 %v877, %v1051
        %v1053 = vpop.f32.mrf.mxu0
        %v1054 = vadd.f32 %v881, %v1053
        %v1055 = vpop.f32.mrf.mxu0
        %v1056 = vpop.f32.mrf.mxu0
        %1057 = vdwg.mxu0
        %1058 = vmatprep.subr.bf16.mxu0 0
        %1059 = vmatpush1.bf16.msra.mxu0 %v992
        %1060 = vmatprep.subr.bf16.mxu0 0
        %1061 = vmatpush1.bf16.msra.mxu0 %v989
        %1062 = vmatprep.subr.bf16.mxu0 0
        %1063 = vmatpush1.bf16.msra.mxu0 %v986
        %1064 = vmatprep.subr.bf16.mxu0 0
        %1065 = vmatpush1.bf16.msra.mxu0 %v983
        %1066 = vmatprep.subr.bf16.mxu0 0
        %1067 = vmatpush1.bf16.msra.mxu0 %v980
        %1068 = vmatprep.subr.bf16.mxu0 0
        %1069 = vmatpush1.bf16.msra.mxu0 %v977
        %1070 = vmatprep.subr.bf16.mxu0 0
        %1071 = vmatpush1.bf16.msra.mxu0 %v974
        %1072 = vmatprep.subr.bf16.mxu0 0
        %1073 = vmatpush1.bf16.msra.mxu0 %v971
        %1074 = vmatprep.subr.bf16.mxu0 0
        %1075 = vmatpush2.bf16.msra.mxu0 0
        %1076 = vmatprep.subr.bf16.mxu0 0
        %1077 = vmatpush2.bf16.msra.mxu0 0
        %1078 = vmatprep.subr.bf16.mxu0 0
        %1079 = vmatpush2.bf16.msra.mxu0 0
        %1080 = vmatprep.subr.bf16.mxu0 0
        %1081 = vmatpush2.bf16.msra.mxu0 0
        %1082 = vmatprep.subr.bf16.mxu0 0
        %1083 = vmatpush2.bf16.msra.mxu0 0
        %1084 = vmatprep.subr.bf16.mxu0 0
        %1085 = vmatpush2.bf16.msra.mxu0 0
        %1086 = vmatprep.subr.bf16.mxu0 0
        %1087 = vmatpush2.bf16.msra.mxu0 0
        %1088 = vmatprep.subr.bf16.mxu0 0
        %1089 = vmatpush2.bf16.msra.mxu0 0
        %1090 = vmatprep.mubr.bf16.mxu0 0
        %1091 = vmatmul.mubr.bf16.gmra.mxu0 %v871
        %v1092 = vpop.f32.mrf.mxu0
        %v1093 = vadd.f32 %v885, %v1092
        %v1094 = vpop.f32.mrf.mxu0
        %v1095 = vpop.f32.mrf.mxu0
        %v1096 = vpop.f32.mrf.mxu0
        %1097 = vdwg.mxu0
        %v1098 = vadd.f32 %v825, %v1052
        %v1099 = vxor.u32 %v1098, 2147483648
        %v1100 = vmul.f32 %v1099, 1.442695
        %v1101 = vpow.pop %v1100
        %v1102 = vadd.f32 %v1101, 1.0
        %v1103 = vrcp.pop %v1102
        %v1104 = vmul.f32 1.0, %v1103
        %v1105 = vadd.f32 %v827, %v1054
        %v1106 = vxor.u32 %v1105, 2147483648
        %v1107 = vmul.f32 %v1106, 1.442695
        %v1108 = vpow.pop %v1107
        %v1109 = vadd.f32 %v1108, 1.0
        %v1110 = vrcp.pop %v1109
        %v1111 = vmul.f32 1.0, %v1110
        %v1112 = vmul.f32 %v1104, %v1093
        %v1113 = vadd.f32 %v866, %v1112
        %v1114 = vtanh.pop %v1113
        %v1115 = vsub.f32 1.0, %v1111
        %v1116 = vmul.f32 %v1115, %v1114
        %v1117 = vmul.f32 %v1111, %v579
        %v1118 = vadd.f32 %v1116, %v1117
        %1119 = vst [vmem:[%s419] sm:$0xff] %v1118
        %v1120 = vpack.c.bf16 %v1118, %v1118
        %1121 = vst [vmem:[#allocation16] sm:$0xf] %v1120
        %1122 = vst [vmem:[#allocation2] sm:$0xff] %v1118
        %s1123 = sand.u32 %s175, 1
        %s1124 = scalar_lea.sflag [#allocation8], %s1123
        %s1125 = sand.u32 %s175, 1
        %s1126 = smul.addr %s1125, 8
        %s1127 = scalar_lea.vmem [#allocation15], %s1126
        // Predicated region
        $region97: #{tpu_custom_call.1} parent=39 // pred_check
          %p1128 = pneg %p185
        $region98: #{tpu_custom_call.1} parent=39 // pred_check_branch
          %1130 = sbr.rel (%p1128) target = $region100
        $region99: #{tpu_custom_call.1} parent=39 // pred_region
          %s1132 = ssub.s32 128, 128
          %1133 = vsyncadd %s1124, %s1132
          %s1134 = smul.addr %s37, 128
          %s1135 = scalar_lea.hbm %s7, %s1134
          %s1137 = sshll.u32 %s1127, 4
          %s1138 = int_to_ptr.vmem [resolvable:$true] %s1137
          %1140 = dma.vmem_to_hbm [thread:$0]  %s1138, 128, %s1135, %s1124
        $region100: #{tpu_custom_call.1} parent=39 // pred_fallthru
          _
        // Predicated region
        $region101: #{tpu_custom_call.1} parent=39 // pred_check
          %p1141 = pneg %p206
        $region102: #{tpu_custom_call.1} parent=39 // pred_check_branch
          %1143 = sbr.rel (%p1141) target = $region104
        $region103: #{tpu_custom_call.1} parent=39 // pred_region
          %s1145 = ssub.s32 64, 64
          %1146 = vsyncadd [#allocation17], %s1145
          %s1148 = sshll.u32 [#allocation16], 4
          %s1149 = int_to_ptr.vmem [resolvable:$true] %s1148
          %1151 = dma.vmem_to_hbm [thread:$0]  %s1149, 64, %s8, [#allocation17]
        $region104: #{tpu_custom_call.1} parent=39 // pred_fallthru
          _
        // Predicated region
        $region105: #{tpu_custom_call.1} parent=39 // pred_check
          %p1152 = pneg %p206
        $region106: #{tpu_custom_call.1} parent=39 // pred_check_branch
          %1154 = sbr.rel (%p1152) target = $region108
        $region107: #{tpu_custom_call.1} parent=39 // pred_region
          %1155 = dma.done [#allocation17], 64
        $region108: #{tpu_custom_call.1} parent=39 // pred_fallthru
          _
      $region40: #{tpu_custom_call.1} parent=5 // pred_fallthru
        _
      %p1156 = scmp.le.s32.totalorder 2, %s32
      // Predicated region
      $region109: #{tpu_custom_call.1} parent=5 // pred_check
        %p1157 = pneg %p1156
      $region110: #{tpu_custom_call.1} parent=5 // pred_check_branch
        %1159 = sbr.rel (%p1157) target = $region112
      $region111: #{tpu_custom_call.1} parent=5 // pred_region
        %s1160 = ssub.s32 %s32, 2
        // Predicated region
        $region113: #{tpu_custom_call.1} parent=111 // pred_check
          %p1161 = pneg %p191
        $region114: #{tpu_custom_call.1} parent=111 // pred_check_branch
          %1163 = sbr.rel (%p1161) target = $region116
        $region115: #{tpu_custom_call.1} parent=111 // pred_region
          %s1164 = sand.u32 %s176, 1
          %s1165 = scalar_lea.sflag [#allocation8], %s1164
          %s1166 = sand.u32 %s176, 1
          %s1167 = smul.addr %s1166, 8
          %s1168 = scalar_lea.vmem [#allocation15], %s1167
          %1169 = dma.done %s1165, 128
        $region116: #{tpu_custom_call.1} parent=111 // pred_fallthru
          _
      $region112: #{tpu_custom_call.1} parent=5 // pred_fallthru
        _
    $region6: #{tpu_custom_call.1} parent=1 // loop_footer
      %s36 = sadd.s32 1, %s32
    $region7: #{tpu_custom_call.1} parent=1 // loop_footer_branch
      %31 = sbr.rel target = $region3
    $region8: #{tpu_custom_call.1} parent=1 // loop_exit
      _
    %1170 = vsyncpa [#allocation7], 1
    %s1171 = scalar_lea.sflag [#allocation7], 1
    %1172 = vsyncpa %s1171, 1
    %1173 = vsyncpa [#allocation10], 1
    %s1174 = scalar_lea.sflag [#allocation10], 1
    %1175 = vsyncpa %s1174, 1
    %1176 = vsyncpa [#allocation13], 1
    %s1177 = scalar_lea.sflag [#allocation13], 1
    %1178 = vsyncpa %s1177, 1
    %1179 = vsyncpa [#allocation8], 1
    %s1180 = scalar_lea.sflag [#allocation8], 1
    %1181 = vsyncpa %s1180, 1
    %1182 = vsyncpa [#allocation17], 1
  %1183 = vsyncmov [#allocation3]
  %s1184 = vpop.sfrf %1183
  %p1185 = scmp.eq.s32.totalorder %s1184, 0
  %p1186 = pneg %p1185
  %1188 = shalt.err (%p1186)
  %s1189 = scalar_lea.sflag [#allocation3], 1
  %1190 = vsyncmov %s1189
  %s1191 = vpop.sfrf %1190
  %p1192 = scmp.eq.s32.totalorder %s1191, 0
  %p1193 = pneg %p1192
  %1195 = shalt.err (%p1193)
  %s1196 = scalar_lea.sflag [#allocation3], 2
  %1197 = vsyncmov %s1196
  %s1198 = vpop.sfrf %1197
  %p1199 = scmp.eq.s32.totalorder %s1198, 0
  %p1200 = pneg %p1199
  %1202 = shalt.err (%p1200)
  %s1203 = scalar_lea.sflag [#allocation3], 3
  %1204 = vsyncmov %s1203
  %s1205 = vpop.sfrf %1204
  %p1206 = scmp.eq.s32.totalorder %s1205, 0
  %p1207 = pneg %p1206
  %1209 = shalt.err (%p1207)
  %s1210 = scalar_lea.sflag [#allocation3], 4
  %1211 = vsyncmov %s1210
  %s1212 = vpop.sfrf %1211
  %p1213 = scmp.eq.s32.totalorder %s1212, 0
  %p1214 = pneg %p1213
  %1216 = shalt.err (%p1214)
  %s1217 = scalar_lea.sflag [#allocation3], 5
  %1218 = vsyncmov %s1217
  %s1219 = vpop.sfrf %1218
  %p1220 = scmp.eq.s32.totalorder %s1219, 0
  %p1221 = pneg %p1220
  %1223 = shalt.err (%p1221)
  %s1224 = scalar_lea.sflag [#allocation3], 6
  %1225 = vsyncmov %s1224
  %s1226 = vpop.sfrf %1225
  %p1227 = scmp.eq.s32.totalorder %s1226, 0
  %p1228 = pneg %p1227
  %1230 = shalt.err (%p1228)
  %s1231 = scalar_lea.sflag [#allocation3], 7
  %1232 = vsyncmov %s1231
  %s1233 = vpop.sfrf %1232
  %p1234 = scmp.eq.s32.totalorder %s1233, 0
  %p1235 = pneg %p1234
  %1237 = shalt.err (%p1235)

</llo_original>
